<compile_context>
chip_gen: v7x
topology: tpu7x:2x2x1
jax: 0.10.0
libtpu: 0.0.40
codegen_flags: <defaults>
</compile_context>

<pallas_src>
import math
import jax
import jax.numpy as jnp
from jax import lax
from jax.experimental import pallas as pl
from jax.experimental.pallas import tpu as pltpu

PAD_ID = 1  # nn.Embedding(padding_idx=1)


# ---------------------------------------------------------------------------
# Pallas kernel: fused input projection + LSTM recurrence + final selection
#                + output Linear, one (batch-chunk, time-chunk) grid step
# ---------------------------------------------------------------------------
def lstm_fused_kernel(emb_ref, sel_ref, wx_ref, b_ref, wh_ref, wo_ref, bo_ref,
                      out_ref, xw_sc, h_sc, c_sc, fin_sc):
    """
    emb_ref : (Tc*Bc, EP) bf16  embedded tokens for this chunk, rows laid out
                                 time-major within the chunk ([t, b] order)
    sel_ref : (Tc, Bc, 1) f32   one-hot final-state selection weights
    wx_ref  : (EP, 4*HP) bf16   input -> gates weights (zero padded)
    b_ref   : (1, 4*HP)  f32    gate bias (zero padded per gate block)
    wh_ref  : (HP, 4*HP) bf16   hidden -> gates weights (zero padded)
    wo_ref  : (HP, OP)   f32    output projection (zero padded rows/cols)
    bo_ref  : (1, OP)    f32    output projection bias (zero padded)
    out_ref : (Bc, OP)   f32    logits (lane-dense; wrapper slices [:, :O])
    xw_sc   : (Tc*Bc, 4*HP) f32 per-chunk hoisted input projection
    h/c/fin : (Bc, HP)   f32    state carried across time chunks
    """
    t_chunk = pl.program_id(1)
    Tc, Bc, _ = sel_ref.shape
    HP = wh_ref.shape[0]

    @pl.when(t_chunk == 0)
    def _init():
        h_sc[...] = jnp.zeros_like(h_sc)
        c_sc[...] = jnp.zeros_like(c_sc)
        fin_sc[...] = jnp.zeros_like(fin_sc)

    # Hoisted input projection for the whole chunk: one bf16 MXU pass with f32
    # accumulation; amortized over Tc recurrence steps.
    xw_sc[...] = jnp.dot(emb_ref[...], wx_ref[...],
                         preferred_element_type=jnp.float32) + b_ref[...]

    def step(t, carry):
        h, c, fin = carry
        row = pl.multiple_of(t * Bc, Bc)              # sublane-aligned rows
        # Only h_prev @ Wh (bf16 operands, f32 accumulate) stays on the serial
        # critical path; gate math runs in f32 on VPU/EUP.
        gates = xw_sc[pl.ds(row, Bc), :] + jnp.dot(
            h.astype(jnp.bfloat16), wh_ref[...],
            preferred_element_type=jnp.float32)
        i = jax.nn.sigmoid(gates[:, 0 * HP:1 * HP])   # 128-lane aligned slices
        f = jax.nn.sigmoid(gates[:, 1 * HP:2 * HP])
        g = jnp.tanh(gates[:, 2 * HP:3 * HP])
        o = jax.nn.sigmoid(gates[:, 3 * HP:4 * HP])
        c = f * c + i * g
        h = o * jnp.tanh(c)
        # sel is one-hot over the true final timestep (0 on pad positions and
        # padded rows), so the running sum reproduces masked_fill + the
        # lengths-1 gather exactly.
        fin = fin + sel_ref[t] * h
        return h, c, fin

    carry = (h_sc[...], c_sc[...], fin_sc[...])
    h, c, fin = lax.fori_loop(0, Tc, step, carry, unroll=min(Tc, 8))
    h_sc[...] = h
    c_sc[...] = c
    fin_sc[...] = fin

    @pl.when(t_chunk == pl.num_programs(1) - 1)
    def _finalize():
        out_ref[...] = (jnp.dot(fin_sc[...], wo_ref[...],
                                preferred_element_type=jnp.float32)
                        + bo_ref[...])


# ---------------------------------------------------------------------------
# Parameter prep: pad E/H/O to 128-lane multiples (exact zero pad), cast the
# matmul weights used on the serial path to bf16.
# ---------------------------------------------------------------------------
def _round_up(n, m):
    return ((n + m - 1) // m) * m


def _pad_gate_cols(w, H, HP):
    """(.., 4H) -> (.., 4HP): each gate block right-padded with zeros."""
    pads = [(0, 0)] * (w.ndim - 1) + [(0, HP - H)]
    blocks = [jnp.pad(w[..., g * H:(g + 1) * H], pads) for g in range(4)]
    return jnp.concatenate(blocks, axis=-1)


def prepare_params(params):
    E = params["wx"].shape[0]
    H = params["wh"].shape[0]
    O = params["w_out_t"].shape[1]
    EP, HP, OP = _round_up(E, 128), _round_up(H, 128), _round_up(O, 128)

    embed_p = jnp.pad(params["embed"].astype(jnp.float32),
                      ((0, 0), (0, EP - E))).astype(jnp.bfloat16)       # (V, EP)
    wx_p = jnp.pad(_pad_gate_cols(params["wx"], H, HP),
                   ((0, EP - E), (0, 0))).astype(jnp.bfloat16)          # (EP, 4HP)
    wh_p = jnp.pad(_pad_gate_cols(params["wh"], H, HP),
                   ((0, HP - H), (0, 0))).astype(jnp.bfloat16)          # (HP, 4HP)
    b_p = _pad_gate_cols(params["b"][None, :], H, HP)                   # (1, 4HP)
    w_out_p = jnp.pad(params["w_out_t"],
                      ((0, HP - H), (0, OP - O))).astype(jnp.float32)   # (HP, OP)
    b_out_p = jnp.pad(params["b_out"], (0, OP - O))[None, :]            # (1, OP)
    return dict(params, embed_p=embed_p, wx_p=wx_p, wh_p=wh_p, b_p=b_p,
                w_out_p=w_out_p, b_out_p=b_out_p)


# ---------------------------------------------------------------------------
# Forward pass
# ---------------------------------------------------------------------------
def lstm_classifier_forward(x_tokens, pp, *, b_chunk=8, t_chunk=8):
    """Reproduces LSTMClassifier.forward (eval mode)."""
    B, T = x_tokens.shape
    O = pp["b_out"].shape[0]
    EP = pp["embed_p"].shape[1]
    HP = pp["wh_p"].shape[0]
    OP = pp["w_out_p"].shape[1]
    G4 = 4 * HP

    BP = _round_up(max(B, b_chunk), b_chunk)   # sublane / MXU-row fill
    TP = _round_up(T, t_chunk)
    nb, nt = BP // b_chunk, TP // t_chunk

    # Padded token matrix: extra rows / timesteps are pure padding (id 1).
    x_p = jnp.full((BP, TP), PAD_ID, jnp.int32).at[:B, :T].set(x_tokens)

    # Final-state selection weights (mirrors the module's B==1 / B>1 paths),
    # zero on padded rows and padded timesteps.
    if B == 1:
        # B==1 branch of the module: take h at t=T-1 regardless of padding.
        sel_tb = jnp.zeros((TP, BP), jnp.float32).at[T - 1, 0].set(1.0)
    else:
        lengths = jnp.sum(x_tokens != PAD_ID, axis=1)                  # (B,)
        onehot = jnp.arange(T)[:, None] == (lengths - 1)[None, :]      # (T, B)
        notpad = x_tokens.T != PAD_ID                                  # masked_fill_
        sel_tb = jnp.zeros((TP, BP), jnp.float32).at[:T, :B].set(
            (onehot & notpad).astype(jnp.float32))
    sel = sel_tb[:, :, None]                                           # (TP, BP, 1)

    # Grouped, time-major embedding gather (XLA glue; index shuffling happens
    # on the tiny int token matrix, not the embedded slab): rows inside one
    # (batch-chunk, time-chunk) tile are laid out [t, b] so the kernel reads a
    # plain 2-D (Tc*Bc, EP) slab with no in-kernel reshape.
    idx = x_p.reshape(nb, b_chunk, TP).transpose(0, 2, 1).reshape(nb, TP * b_chunk)
    emb_g = jnp.take(pp["embed_p"], idx, axis=0)        # (nb, TP*Bc, EP) bf16

    # Dropout(p=0.5) before the output Linear: identity at inference time.
    out_padded = pl.pallas_call(
        lstm_fused_kernel,
        out_shape=jax.ShapeDtypeStruct((BP, OP), jnp.float32),
        grid_spec=pltpu.PrefetchScalarGridSpec(
            num_scalar_prefetch=0,
            grid=(nb, nt),
            in_specs=[
                pl.BlockSpec((None, t_chunk * b_chunk, EP),
                             lambda b, t: (b, t, 0)),                  # emb chunk
                pl.BlockSpec((t_chunk, b_chunk, 1),
                             lambda b, t: (t, b, 0)),                  # sel chunk
                pl.BlockSpec((EP, G4), lambda b, t: (0, 0)),           # Wx
                pl.BlockSpec((1, G4), lambda b, t: (0, 0)),            # bias
                pl.BlockSpec((HP, G4), lambda b, t: (0, 0)),           # Wh
                pl.BlockSpec((HP, OP), lambda b, t: (0, 0)),           # W_out
                pl.BlockSpec((1, OP), lambda b, t: (0, 0)),            # b_out
            ],
            out_specs=pl.BlockSpec((b_chunk, OP), lambda b, t: (b, 0)),
            scratch_shapes=[
                pltpu.VMEM((t_chunk * b_chunk, G4), jnp.float32),  # xw chunk
                pltpu.VMEM((b_chunk, HP), jnp.float32),            # h carry
                pltpu.VMEM((b_chunk, HP), jnp.float32),            # c carry
                pltpu.VMEM((b_chunk, HP), jnp.float32),            # final carry
            ]),
        compiler_params=pltpu.CompilerParams(
            # batch chunks are independent (sharded across v7x's 2 TCs); the
            # time axis carries state through scratch -> "arbitrary".
            dimension_semantics=("parallel", "arbitrary"),
            vmem_limit_bytes=48 * 1024 * 1024),
    )(emb_g, sel, pp["wx_p"], pp["b_p"], pp["wh_p"], pp["w_out_p"],
      pp["b_out_p"])

    return out_padded[:B, :O]


# ---------------------------------------------------------------------------
# Pure-JAX f32 reference (mirrors the PyTorch code literally, unpadded)
# ---------------------------------------------------------------------------
def reference_forward(x_tokens, params):
    B, T = x_tokens.shape
    H = params["wh"].shape[0]
    emb = jnp.take(params["embed"], x_tokens, axis=0).astype(jnp.float32)
    h = jnp.zeros((B, H), jnp.float32)
    c = jnp.zeros((B, H), jnp.float32)
    outs = []
    for t in range(T):
        x_t = emb[:, t]
        states = x_t @ params["wx"] + h @ params["wh"] + params["b"]
        i = jax.nn.sigmoid(states[:, 0 * H:1 * H])
        f = jax.nn.sigmoid(states[:, 1 * H:2 * H])
        g = jnp.tanh(states[:, 2 * H:3 * H])
        o = jax.nn.sigmoid(states[:, 3 * H:4 * H])
        c = f * c + i * g
        h = o * jnp.tanh(c)
        outs.append(h)
    if B == 1:
        final = h
    else:
        outputs = jnp.stack(outs, axis=0).transpose(1, 0, 2)     # (B, T, H)
        outputs = jnp.where((x_tokens == PAD_ID)[:, :, None], 0.0, outputs)
        lengths = jnp.sum(x_tokens != PAD_ID, axis=1)
        final = outputs[jnp.arange(B), lengths - 1]
    return final @ params["w_out_t"] + params["b_out"]


# ---------------------------------------------------------------------------
# Main
# ---------------------------------------------------------------------------
if __name__ == "__main__":
    VOCAB, EMB, HID, OUT = 16, 16, 32, 4
    B, T = 2, 8

    key = jax.random.PRNGKey(0)
    k_vec, k_w, k_b, k_wo, k_bo, k_tok = jax.random.split(key, 6)

    # Embedding table ("vectors", frozen).
    embed = jax.random.normal(k_vec, (VOCAB, EMB), jnp.float32)

    # MyLSTMCell.transform = Linear(EMB+HID, 4*HID); uniform(-stdv, stdv).
    stdv = 1.0 / math.sqrt(HID)
    W = jax.random.uniform(k_w, (4 * HID, EMB + HID), jnp.float32, -stdv, stdv)
    b = jax.random.uniform(k_b, (4 * HID,), jnp.float32, -stdv, stdv)
    wx = W[:, :EMB].T          # (EMB, 4H)
    wh = W[:, EMB:].T          # (HID, 4H)

    # output_layer Linear(HID, OUT).
    W_out = jax.random.uniform(k_wo, (OUT, HID), jnp.float32, -stdv, stdv)
    b_out = jax.random.uniform(k_bo, (OUT,), jnp.float32, -stdv, stdv)

    params = {
        "embed": embed,
        "wx": wx, "wh": wh, "b": b,
        "w_out_t": W_out.T, "b_out": b_out,
    }
    pp = prepare_params(params)   # one-time lane padding + bf16 weight cast

    # Token ids (B, T) int32 with trailing padding token 1 (padding_idx=1).
    content = jax.random.randint(k_tok, (B, T), 2, VOCAB, jnp.int32)
    lengths = jnp.array([5, 8], jnp.int32)
    pos = jnp.arange(T, dtype=jnp.int32)[None, :]
    x_tokens = jnp.where(pos < lengths[:, None], content, 1)

    forward = jax.jit(lstm_classifier_forward)
    logits = forward(x_tokens, pp)
    logits = jax.block_until_ready(logits)

    ref = reference_forward(x_tokens, params)
    assert logits.shape == (B, OUT)
    # bf16 MXU operands with f32 accumulation -> loosened tolerance vs. the
    # pure-f32 reference (the structural math is exact).
    assert jnp.allclose(logits, ref, atol=3e-2, rtol=3e-2), (logits, ref)

    print("KERNEL_OK")
</pallas_src>

<mosaic_0001>
module attributes {stable_mosaic.version = 11 : i64} {
  func.func @lstm_fused_kernel(%arg0: i32, %arg1: i32, %arg2: memref<1x64x128xbf16, #tpu.memory_space<vmem>>, %arg3: memref<8x8x1xf32, #tpu.memory_space<vmem>>, %arg4: memref<128x512xbf16, #tpu.memory_space<vmem>>, %arg5: memref<1x512xf32, #tpu.memory_space<vmem>>, %arg6: memref<128x512xbf16, #tpu.memory_space<vmem>>, %arg7: memref<128x128xf32, #tpu.memory_space<vmem>>, %arg8: memref<1x128xf32, #tpu.memory_space<vmem>>, %arg9: memref<8x128xf32, #tpu.memory_space<vmem>>, %arg10: memref<64x512xf32, #tpu.memory_space<vmem>>, %arg11: memref<8x128xf32, #tpu.memory_space<vmem>>, %arg12: memref<8x128xf32, #tpu.memory_space<vmem>>, %arg13: memref<8x128xf32, #tpu.memory_space<vmem>>) attributes {dimension_semantics = [#tpu.dimension_semantics<parallel>, #tpu.dimension_semantics<arbitrary>], iteration_bounds = array<i64: 1, 1>, scalar_prefetch = 0 : i64, scratch_operands = 4 : i64, tpu.core_type = #tpu.core_type<tc>, window_params = [{transform_indices = @transform_0, window_bounds = array<i64: 1, 64, 128>}, {transform_indices = @transform_1, window_bounds = array<i64: 8, 8, 1>}, {pipeline_mode = #tpu.pipeline_mode<synchronous>, transform_indices = @transform_2, window_bounds = array<i64: 128, 512>}, {pipeline_mode = #tpu.pipeline_mode<synchronous>, transform_indices = @transform_3, window_bounds = array<i64: 1, 512>}, {pipeline_mode = #tpu.pipeline_mode<synchronous>, transform_indices = @transform_4, window_bounds = array<i64: 128, 512>}, {pipeline_mode = #tpu.pipeline_mode<synchronous>, transform_indices = @transform_5, window_bounds = array<i64: 128, 128>}, {pipeline_mode = #tpu.pipeline_mode<synchronous>, transform_indices = @transform_6, window_bounds = array<i64: 1, 128>}, {transform_indices = @transform_7, window_bounds = array<i64: 8, 128>}]} {
    %c0_i32 = arith.constant 0 : i32
    %0 = arith.cmpi eq, %arg1, %c0_i32 : i32
    %1 = arith.extui %0 : i1 to i32
    %c0_i32_0 = arith.constant 0 : i32
    %2 = arith.cmpi ne, %1, %c0_i32_0 : i32
    scf.if %2 {
      %cst_104 = arith.constant 0.000000e+00 : f32
      %332 = vector.broadcast %cst_104 : f32 to vector<8x128xf32>
      %c0_105 = arith.constant 0 : index
      %c0_106 = arith.constant 0 : index
      %333 = vector.load %arg11[%c0_105, %c0_106] : memref<8x128xf32, #tpu.memory_space<vmem>>, vector<8x128xf32>
      tpu.vector_store %arg11[%c0_105, %c0_106], %332 {strides = array<i32>} : memref<8x128xf32, #tpu.memory_space<vmem>>, vector<8x128xf32>,
      %cst_107 = arith.constant 0.000000e+00 : f32
      %334 = vector.broadcast %cst_107 : f32 to vector<8x128xf32>
      %c0_108 = arith.constant 0 : index
      %c0_109 = arith.constant 0 : index
      %335 = vector.load %arg12[%c0_108, %c0_109] : memref<8x128xf32, #tpu.memory_space<vmem>>, vector<8x128xf32>
      tpu.vector_store %arg12[%c0_108, %c0_109], %334 {strides = array<i32>} : memref<8x128xf32, #tpu.memory_space<vmem>>, vector<8x128xf32>,
      %cst_110 = arith.constant 0.000000e+00 : f32
      %336 = vector.broadcast %cst_110 : f32 to vector<8x128xf32>
      %c0_111 = arith.constant 0 : index
      %c0_112 = arith.constant 0 : index
      %337 = vector.load %arg13[%c0_111, %c0_112] : memref<8x128xf32, #tpu.memory_space<vmem>>, vector<8x128xf32>
      tpu.vector_store %arg13[%c0_111, %c0_112], %336 {strides = array<i32>} : memref<8x128xf32, #tpu.memory_space<vmem>>, vector<8x128xf32>,
    } else {
    }
    %c0 = arith.constant 0 : index
    %c0_1 = arith.constant 0 : index
    %c0_2 = arith.constant 0 : index
    %3 = vector.load %arg2[%c0, %c0_1, %c0_2] : memref<1x64x128xbf16, #tpu.memory_space<vmem>>, vector<1x64x128xbf16>
    %4 = vector.shape_cast %3 : vector<1x64x128xbf16> to vector<64x128xbf16>
    %c0_3 = arith.constant 0 : index
    %c0_4 = arith.constant 0 : index
    %5 = vector.load %arg4[%c0_3, %c0_4] : memref<128x512xbf16, #tpu.memory_space<vmem>>, vector<128x512xbf16>
    %cst = arith.constant dense<0.000000e+00> : vector<64x512xf32>
    %6 = tpu.matmul %4, %5, %cst {dimension_numbers = #tpu.dot_dimension_numbers<[1], [0], [0], [1], [0, 0, 1, 1], [], []>} : vector<64x128xbf16>, vector<128x512xbf16>, vector<64x512xf32> -> vector<64x512xf32>
    %c0_5 = arith.constant 0 : index
    %c0_6 = arith.constant 0 : index
    %7 = vector.load %arg5[%c0_5, %c0_6] : memref<1x512xf32, #tpu.memory_space<vmem>>, vector<1x512xf32>
    %8 = vector.broadcast %7 : vector<1x512xf32> to vector<64x512xf32>
    %9 = arith.addf %6, %8 : vector<64x512xf32>
    %c0_7 = arith.constant 0 : index
    %c0_8 = arith.constant 0 : index
    %10 = vector.load %arg10[%c0_7, %c0_8] : memref<64x512xf32, #tpu.memory_space<vmem>>, vector<64x512xf32>
    tpu.vector_store %arg10[%c0_7, %c0_8], %9 {strides = array<i32>} : memref<64x512xf32, #tpu.memory_space<vmem>>, vector<64x512xf32>,
    %c0_9 = arith.constant 0 : index
    %c0_10 = arith.constant 0 : index
    %11 = vector.load %arg11[%c0_9, %c0_10] : memref<8x128xf32, #tpu.memory_space<vmem>>, vector<8x128xf32>
    %c0_11 = arith.constant 0 : index
    %c0_12 = arith.constant 0 : index
    %12 = vector.load %arg12[%c0_11, %c0_12] : memref<8x128xf32, #tpu.memory_space<vmem>>, vector<8x128xf32>
    %c0_13 = arith.constant 0 : index
    %c0_14 = arith.constant 0 : index
    %13 = vector.load %arg13[%c0_13, %c0_14] : memref<8x128xf32, #tpu.memory_space<vmem>>, vector<8x128xf32>
    %c0_i32_15 = arith.constant 0 : i32
    %c8_i32 = arith.constant 8 : i32
    %14 = arith.muli %c0_i32_15, %c8_i32 : i32
    %15 = tpu.assume_multiple %14, 8 : i32
    %16 = arith.index_cast %15 : i32 to index
    %c0_16 = arith.constant 0 : index
    %17 = vector.load %arg10[%16, %c0_16] : memref<64x512xf32, #tpu.memory_space<vmem>>, vector<8x512xf32>
    %18 = arith.truncf %11 : vector<8x128xf32> to vector<8x128xbf16>
    %c0_17 = arith.constant 0 : index
    %c0_18 = arith.constant 0 : index
    %19 = vector.load %arg6[%c0_17, %c0_18] : memref<128x512xbf16, #tpu.memory_space<vmem>>, vector<128x512xbf16>
    %cst_19 = arith.constant dense<0.000000e+00> : vector<8x512xf32>
    %20 = tpu.matmul %18, %19, %cst_19 {dimension_numbers = #tpu.dot_dimension_numbers<[1], [0], [0], [1], [0, 0, 1, 1], [], []>} : vector<8x128xbf16>, vector<128x512xbf16>, vector<8x512xf32> -> vector<8x512xf32>
    %21 = arith.addf %17, %20 : vector<8x512xf32>
    %22 = vector.extract_strided_slice %21 {offsets = [0, 0], sizes = [8, 128], strides = [1, 1]} : vector<8x512xf32> to vector<8x128xf32>
    %23 = arith.negf %22 : vector<8x128xf32>
    %24 = math.exp %23 : vector<8x128xf32>
    %cst_20 = arith.constant 1.000000e+00 : f32
    %25 = vector.broadcast %cst_20 : f32 to vector<8x128xf32>
    %26 = arith.addf %25, %24 : vector<8x128xf32>
    %27 = arith.divf %25, %26 : vector<8x128xf32>
    %28 = vector.extract_strided_slice %21 {offsets = [0, 128], sizes = [8, 128], strides = [1, 1]} : vector<8x512xf32> to vector<8x128xf32>
    %29 = arith.negf %28 : vector<8x128xf32>
    %30 = math.exp %29 : vector<8x128xf32>
    %cst_21 = arith.constant 1.000000e+00 : f32
    %31 = vector.broadcast %cst_21 : f32 to vector<8x128xf32>
    %32 = arith.addf %31, %30 : vector<8x128xf32>
    %33 = arith.divf %31, %32 : vector<8x128xf32>
    %34 = vector.extract_strided_slice %21 {offsets = [0, 256], sizes = [8, 128], strides = [1, 1]} : vector<8x512xf32> to vector<8x128xf32>
    %35 = math.tanh %34 : vector<8x128xf32>
    %36 = vector.extract_strided_slice %21 {offsets = [0, 384], sizes = [8, 128], strides = [1, 1]} : vector<8x512xf32> to vector<8x128xf32>
    %37 = arith.negf %36 : vector<8x128xf32>
    %38 = math.exp %37 : vector<8x128xf32>
    %cst_22 = arith.constant 1.000000e+00 : f32
    %39 = vector.broadcast %cst_22 : f32 to vector<8x128xf32>
    %40 = arith.addf %39, %38 : vector<8x128xf32>
    %41 = arith.divf %39, %40 : vector<8x128xf32>
    %42 = arith.mulf %33, %12 : vector<8x128xf32>
    %43 = arith.mulf %27, %35 : vector<8x128xf32>
    %44 = arith.addf %42, %43 : vector<8x128xf32>
    %45 = math.tanh %44 : vector<8x128xf32>
    %46 = arith.mulf %41, %45 : vector<8x128xf32>
    %47 = arith.index_cast %c0_i32_15 : i32 to index
    %c0_23 = arith.constant 0 : index
    %c0_24 = arith.constant 0 : index
    %48 = vector.load %arg3[%47, %c0_23, %c0_24] : memref<8x8x1xf32, #tpu.memory_space<vmem>>, vector<1x8x1xf32>
    %49 = vector.shape_cast %48 : vector<1x8x1xf32> to vector<8x1xf32>
    %50 = vector.broadcast %49 : vector<8x1xf32> to vector<8x128xf32>
    %51 = arith.mulf %50, %46 : vector<8x128xf32>
    %52 = arith.addf %13, %51 : vector<8x128xf32>
    %c1_i32 = arith.constant 1 : i32
    %c8_i32_25 = arith.constant 8 : i32
    %53 = arith.muli %c1_i32, %c8_i32_25 : i32
    %54 = tpu.assume_multiple %53, 8 : i32
    %55 = arith.index_cast %54 : i32 to index
    %c0_26 = arith.constant 0 : index
    %56 = vector.load %arg10[%55, %c0_26] : memref<64x512xf32, #tpu.memory_space<vmem>>, vector<8x512xf32>
    %57 = arith.truncf %46 : vector<8x128xf32> to vector<8x128xbf16>
    %c0_27 = arith.constant 0 : index
    %c0_28 = arith.constant 0 : index
    %58 = vector.load %arg6[%c0_27, %c0_28] : memref<128x512xbf16, #tpu.memory_space<vmem>>, vector<128x512xbf16>
    %cst_29 = arith.constant dense<0.000000e+00> : vector<8x512xf32>
    %59 = tpu.matmul %57, %58, %cst_29 {dimension_numbers = #tpu.dot_dimension_numbers<[1], [0], [0], [1], [0, 0, 1, 1], [], []>} : vector<8x128xbf16>, vector<128x512xbf16>, vector<8x512xf32> -> vector<8x512xf32>
    %60 = arith.addf %56, %59 : vector<8x512xf32>
    %61 = vector.extract_strided_slice %60 {offsets = [0, 0], sizes = [8, 128], strides = [1, 1]} : vector<8x512xf32> to vector<8x128xf32>
    %62 = arith.negf %61 : vector<8x128xf32>
    %63 = math.exp %62 : vector<8x128xf32>
    %cst_30 = arith.constant 1.000000e+00 : f32
    %64 = vector.broadcast %cst_30 : f32 to vector<8x128xf32>
    %65 = arith.addf %64, %63 : vector<8x128xf32>
    %66 = arith.divf %64, %65 : vector<8x128xf32>
    %67 = vector.extract_strided_slice %60 {offsets = [0, 128], sizes = [8, 128], strides = [1, 1]} : vector<8x512xf32> to vector<8x128xf32>
    %68 = arith.negf %67 : vector<8x128xf32>
    %69 = math.exp %68 : vector<8x128xf32>
    %cst_31 = arith.constant 1.000000e+00 : f32
    %70 = vector.broadcast %cst_31 : f32 to vector<8x128xf32>
    %71 = arith.addf %70, %69 : vector<8x128xf32>
    %72 = arith.divf %70, %71 : vector<8x128xf32>
    %73 = vector.extract_strided_slice %60 {offsets = [0, 256], sizes = [8, 128], strides = [1, 1]} : vector<8x512xf32> to vector<8x128xf32>
    %74 = math.tanh %73 : vector<8x128xf32>
    %75 = vector.extract_strided_slice %60 {offsets = [0, 384], sizes = [8, 128], strides = [1, 1]} : vector<8x512xf32> to vector<8x128xf32>
    %76 = arith.negf %75 : vector<8x128xf32>
    %77 = math.exp %76 : vector<8x128xf32>
    %cst_32 = arith.constant 1.000000e+00 : f32
    %78 = vector.broadcast %cst_32 : f32 to vector<8x128xf32>
    %79 = arith.addf %78, %77 : vector<8x128xf32>
    %80 = arith.divf %78, %79 : vector<8x128xf32>
    %81 = arith.mulf %72, %44 : vector<8x128xf32>
    %82 = arith.mulf %66, %74 : vector<8x128xf32>
    %83 = arith.addf %81, %82 : vector<8x128xf32>
    %84 = math.tanh %83 : vector<8x128xf32>
    %85 = arith.mulf %80, %84 : vector<8x128xf32>
    %86 = arith.index_cast %c1_i32 : i32 to index
    %c0_33 = arith.constant 0 : index
    %c0_34 = arith.constant 0 : index
    %87 = vector.load %arg3[%86, %c0_33, %c0_34] : memref<8x8x1xf32, #tpu.memory_space<vmem>>, vector<1x8x1xf32>
    %88 = vector.shape_cast %87 : vector<1x8x1xf32> to vector<8x1xf32>
    %89 = vector.broadcast %88 : vector<8x1xf32> to vector<8x128xf32>
    %90 = arith.mulf %89, %85 : vector<8x128xf32>
    %91 = arith.addf %52, %90 : vector<8x128xf32>
    %c2_i32 = arith.constant 2 : i32
    %c8_i32_35 = arith.constant 8 : i32
    %92 = arith.muli %c2_i32, %c8_i32_35 : i32
    %93 = tpu.assume_multiple %92, 8 : i32
    %94 = arith.index_cast %93 : i32 to index
    %c0_36 = arith.constant 0 : index
    %95 = vector.load %arg10[%94, %c0_36] : memref<64x512xf32, #tpu.memory_space<vmem>>, vector<8x512xf32>
    %96 = arith.truncf %85 : vector<8x128xf32> to vector<8x128xbf16>
    %c0_37 = arith.constant 0 : index
    %c0_38 = arith.constant 0 : index
    %97 = vector.load %arg6[%c0_37, %c0_38] : memref<128x512xbf16, #tpu.memory_space<vmem>>, vector<128x512xbf16>
    %cst_39 = arith.constant dense<0.000000e+00> : vector<8x512xf32>
    %98 = tpu.matmul %96, %97, %cst_39 {dimension_numbers = #tpu.dot_dimension_numbers<[1], [0], [0], [1], [0, 0, 1, 1], [], []>} : vector<8x128xbf16>, vector<128x512xbf16>, vector<8x512xf32> -> vector<8x512xf32>
    %99 = arith.addf %95, %98 : vector<8x512xf32>
    %100 = vector.extract_strided_slice %99 {offsets = [0, 0], sizes = [8, 128], strides = [1, 1]} : vector<8x512xf32> to vector<8x128xf32>
    %101 = arith.negf %100 : vector<8x128xf32>
    %102 = math.exp %101 : vector<8x128xf32>
    %cst_40 = arith.constant 1.000000e+00 : f32
    %103 = vector.broadcast %cst_40 : f32 to vector<8x128xf32>
    %104 = arith.addf %103, %102 : vector<8x128xf32>
    %105 = arith.divf %103, %104 : vector<8x128xf32>
    %106 = vector.extract_strided_slice %99 {offsets = [0, 128], sizes = [8, 128], strides = [1, 1]} : vector<8x512xf32> to vector<8x128xf32>
    %107 = arith.negf %106 : vector<8x128xf32>
    %108 = math.exp %107 : vector<8x128xf32>
    %cst_41 = arith.constant 1.000000e+00 : f32
    %109 = vector.broadcast %cst_41 : f32 to vector<8x128xf32>
    %110 = arith.addf %109, %108 : vector<8x128xf32>
    %111 = arith.divf %109, %110 : vector<8x128xf32>
    %112 = vector.extract_strided_slice %99 {offsets = [0, 256], sizes = [8, 128], strides = [1, 1]} : vector<8x512xf32> to vector<8x128xf32>
    %113 = math.tanh %112 : vector<8x128xf32>
    %114 = vector.extract_strided_slice %99 {offsets = [0, 384], sizes = [8, 128], strides = [1, 1]} : vector<8x512xf32> to vector<8x128xf32>
    %115 = arith.negf %114 : vector<8x128xf32>
    %116 = math.exp %115 : vector<8x128xf32>
    %cst_42 = arith.constant 1.000000e+00 : f32
    %117 = vector.broadcast %cst_42 : f32 to vector<8x128xf32>
    %118 = arith.addf %117, %116 : vector<8x128xf32>
    %119 = arith.divf %117, %118 : vector<8x128xf32>
    %120 = arith.mulf %111, %83 : vector<8x128xf32>
    %121 = arith.mulf %105, %113 : vector<8x128xf32>
    %122 = arith.addf %120, %121 : vector<8x128xf32>
    %123 = math.tanh %122 : vector<8x128xf32>
    %124 = arith.mulf %119, %123 : vector<8x128xf32>
    %125 = arith.index_cast %c2_i32 : i32 to index
    %c0_43 = arith.constant 0 : index
    %c0_44 = arith.constant 0 : index
    %126 = vector.load %arg3[%125, %c0_43, %c0_44] : memref<8x8x1xf32, #tpu.memory_space<vmem>>, vector<1x8x1xf32>
    %127 = vector.shape_cast %126 : vector<1x8x1xf32> to vector<8x1xf32>
    %128 = vector.broadcast %127 : vector<8x1xf32> to vector<8x128xf32>
    %129 = arith.mulf %128, %124 : vector<8x128xf32>
    %130 = arith.addf %91, %129 : vector<8x128xf32>
    %c3_i32 = arith.constant 3 : i32
    %c8_i32_45 = arith.constant 8 : i32
    %131 = arith.muli %c3_i32, %c8_i32_45 : i32
    %132 = tpu.assume_multiple %131, 8 : i32
    %133 = arith.index_cast %132 : i32 to index
    %c0_46 = arith.constant 0 : index
    %134 = vector.load %arg10[%133, %c0_46] : memref<64x512xf32, #tpu.memory_space<vmem>>, vector<8x512xf32>
    %135 = arith.truncf %124 : vector<8x128xf32> to vector<8x128xbf16>
    %c0_47 = arith.constant 0 : index
    %c0_48 = arith.constant 0 : index
    %136 = vector.load %arg6[%c0_47, %c0_48] : memref<128x512xbf16, #tpu.memory_space<vmem>>, vector<128x512xbf16>
    %cst_49 = arith.constant dense<0.000000e+00> : vector<8x512xf32>
    %137 = tpu.matmul %135, %136, %cst_49 {dimension_numbers = #tpu.dot_dimension_numbers<[1], [0], [0], [1], [0, 0, 1, 1], [], []>} : vector<8x128xbf16>, vector<128x512xbf16>, vector<8x512xf32> -> vector<8x512xf32>
    %138 = arith.addf %134, %137 : vector<8x512xf32>
    %139 = vector.extract_strided_slice %138 {offsets = [0, 0], sizes = [8, 128], strides = [1, 1]} : vector<8x512xf32> to vector<8x128xf32>
    %140 = arith.negf %139 : vector<8x128xf32>
    %141 = math.exp %140 : vector<8x128xf32>
    %cst_50 = arith.constant 1.000000e+00 : f32
    %142 = vector.broadcast %cst_50 : f32 to vector<8x128xf32>
    %143 = arith.addf %142, %141 : vector<8x128xf32>
    %144 = arith.divf %142, %143 : vector<8x128xf32>
    %145 = vector.extract_strided_slice %138 {offsets = [0, 128], sizes = [8, 128], strides = [1, 1]} : vector<8x512xf32> to vector<8x128xf32>
    %146 = arith.negf %145 : vector<8x128xf32>
    %147 = math.exp %146 : vector<8x128xf32>
    %cst_51 = arith.constant 1.000000e+00 : f32
    %148 = vector.broadcast %cst_51 : f32 to vector<8x128xf32>
    %149 = arith.addf %148, %147 : vector<8x128xf32>
    %150 = arith.divf %148, %149 : vector<8x128xf32>
    %151 = vector.extract_strided_slice %138 {offsets = [0, 256], sizes = [8, 128], strides = [1, 1]} : vector<8x512xf32> to vector<8x128xf32>
    %152 = math.tanh %151 : vector<8x128xf32>
    %153 = vector.extract_strided_slice %138 {offsets = [0, 384], sizes = [8, 128], strides = [1, 1]} : vector<8x512xf32> to vector<8x128xf32>
    %154 = arith.negf %153 : vector<8x128xf32>
    %155 = math.exp %154 : vector<8x128xf32>
    %cst_52 = arith.constant 1.000000e+00 : f32
    %156 = vector.broadcast %cst_52 : f32 to vector<8x128xf32>
    %157 = arith.addf %156, %155 : vector<8x128xf32>
    %158 = arith.divf %156, %157 : vector<8x128xf32>
    %159 = arith.mulf %150, %122 : vector<8x128xf32>
    %160 = arith.mulf %144, %152 : vector<8x128xf32>
    %161 = arith.addf %159, %160 : vector<8x128xf32>
    %162 = math.tanh %161 : vector<8x128xf32>
    %163 = arith.mulf %158, %162 : vector<8x128xf32>
    %164 = arith.index_cast %c3_i32 : i32 to index
    %c0_53 = arith.constant 0 : index
    %c0_54 = arith.constant 0 : index
    %165 = vector.load %arg3[%164, %c0_53, %c0_54] : memref<8x8x1xf32, #tpu.memory_space<vmem>>, vector<1x8x1xf32>
    %166 = vector.shape_cast %165 : vector<1x8x1xf32> to vector<8x1xf32>
    %167 = vector.broadcast %166 : vector<8x1xf32> to vector<8x128xf32>
    %168 = arith.mulf %167, %163 : vector<8x128xf32>
    %169 = arith.addf %130, %168 : vector<8x128xf32>
    %c4_i32 = arith.constant 4 : i32
    %c8_i32_55 = arith.constant 8 : i32
    %170 = arith.muli %c4_i32, %c8_i32_55 : i32
    %171 = tpu.assume_multiple %170, 8 : i32
    %172 = arith.index_cast %171 : i32 to index
    %c0_56 = arith.constant 0 : index
    %173 = vector.load %arg10[%172, %c0_56] : memref<64x512xf32, #tpu.memory_space<vmem>>, vector<8x512xf32>
    %174 = arith.truncf %163 : vector<8x128xf32> to vector<8x128xbf16>
    %c0_57 = arith.constant 0 : index
    %c0_58 = arith.constant 0 : index
    %175 = vector.load %arg6[%c0_57, %c0_58] : memref<128x512xbf16, #tpu.memory_space<vmem>>, vector<128x512xbf16>
    %cst_59 = arith.constant dense<0.000000e+00> : vector<8x512xf32>
    %176 = tpu.matmul %174, %175, %cst_59 {dimension_numbers = #tpu.dot_dimension_numbers<[1], [0], [0], [1], [0, 0, 1, 1], [], []>} : vector<8x128xbf16>, vector<128x512xbf16>, vector<8x512xf32> -> vector<8x512xf32>
    %177 = arith.addf %173, %176 : vector<8x512xf32>
    %178 = vector.extract_strided_slice %177 {offsets = [0, 0], sizes = [8, 128], strides = [1, 1]} : vector<8x512xf32> to vector<8x128xf32>
    %179 = arith.negf %178 : vector<8x128xf32>
    %180 = math.exp %179 : vector<8x128xf32>
    %cst_60 = arith.constant 1.000000e+00 : f32
    %181 = vector.broadcast %cst_60 : f32 to vector<8x128xf32>
    %182 = arith.addf %181, %180 : vector<8x128xf32>
    %183 = arith.divf %181, %182 : vector<8x128xf32>
    %184 = vector.extract_strided_slice %177 {offsets = [0, 128], sizes = [8, 128], strides = [1, 1]} : vector<8x512xf32> to vector<8x128xf32>
    %185 = arith.negf %184 : vector<8x128xf32>
    %186 = math.exp %185 : vector<8x128xf32>
    %cst_61 = arith.constant 1.000000e+00 : f32
    %187 = vector.broadcast %cst_61 : f32 to vector<8x128xf32>
    %188 = arith.addf %187, %186 : vector<8x128xf32>
    %189 = arith.divf %187, %188 : vector<8x128xf32>
    %190 = vector.extract_strided_slice %177 {offsets = [0, 256], sizes = [8, 128], strides = [1, 1]} : vector<8x512xf32> to vector<8x128xf32>
    %191 = math.tanh %190 : vector<8x128xf32>
    %192 = vector.extract_strided_slice %177 {offsets = [0, 384], sizes = [8, 128], strides = [1, 1]} : vector<8x512xf32> to vector<8x128xf32>
    %193 = arith.negf %192 : vector<8x128xf32>
    %194 = math.exp %193 : vector<8x128xf32>
    %cst_62 = arith.constant 1.000000e+00 : f32
    %195 = vector.broadcast %cst_62 : f32 to vector<8x128xf32>
    %196 = arith.addf %195, %194 : vector<8x128xf32>
    %197 = arith.divf %195, %196 : vector<8x128xf32>
    %198 = arith.mulf %189, %161 : vector<8x128xf32>
    %199 = arith.mulf %183, %191 : vector<8x128xf32>
    %200 = arith.addf %198, %199 : vector<8x128xf32>
    %201 = math.tanh %200 : vector<8x128xf32>
    %202 = arith.mulf %197, %201 : vector<8x128xf32>
    %203 = arith.index_cast %c4_i32 : i32 to index
    %c0_63 = arith.constant 0 : index
    %c0_64 = arith.constant 0 : index
    %204 = vector.load %arg3[%203, %c0_63, %c0_64] : memref<8x8x1xf32, #tpu.memory_space<vmem>>, vector<1x8x1xf32>
    %205 = vector.shape_cast %204 : vector<1x8x1xf32> to vector<8x1xf32>
    %206 = vector.broadcast %205 : vector<8x1xf32> to vector<8x128xf32>
    %207 = arith.mulf %206, %202 : vector<8x128xf32>
    %208 = arith.addf %169, %207 : vector<8x128xf32>
    %c5_i32 = arith.constant 5 : i32
    %c8_i32_65 = arith.constant 8 : i32
    %209 = arith.muli %c5_i32, %c8_i32_65 : i32
    %210 = tpu.assume_multiple %209, 8 : i32
    %211 = arith.index_cast %210 : i32 to index
    %c0_66 = arith.constant 0 : index
    %212 = vector.load %arg10[%211, %c0_66] : memref<64x512xf32, #tpu.memory_space<vmem>>, vector<8x512xf32>
    %213 = arith.truncf %202 : vector<8x128xf32> to vector<8x128xbf16>
    %c0_67 = arith.constant 0 : index
    %c0_68 = arith.constant 0 : index
    %214 = vector.load %arg6[%c0_67, %c0_68] : memref<128x512xbf16, #tpu.memory_space<vmem>>, vector<128x512xbf16>
    %cst_69 = arith.constant dense<0.000000e+00> : vector<8x512xf32>
    %215 = tpu.matmul %213, %214, %cst_69 {dimension_numbers = #tpu.dot_dimension_numbers<[1], [0], [0], [1], [0, 0, 1, 1], [], []>} : vector<8x128xbf16>, vector<128x512xbf16>, vector<8x512xf32> -> vector<8x512xf32>
    %216 = arith.addf %212, %215 : vector<8x512xf32>
    %217 = vector.extract_strided_slice %216 {offsets = [0, 0], sizes = [8, 128], strides = [1, 1]} : vector<8x512xf32> to vector<8x128xf32>
    %218 = arith.negf %217 : vector<8x128xf32>
    %219 = math.exp %218 : vector<8x128xf32>
    %cst_70 = arith.constant 1.000000e+00 : f32
    %220 = vector.broadcast %cst_70 : f32 to vector<8x128xf32>
    %221 = arith.addf %220, %219 : vector<8x128xf32>
    %222 = arith.divf %220, %221 : vector<8x128xf32>
    %223 = vector.extract_strided_slice %216 {offsets = [0, 128], sizes = [8, 128], strides = [1, 1]} : vector<8x512xf32> to vector<8x128xf32>
    %224 = arith.negf %223 : vector<8x128xf32>
    %225 = math.exp %224 : vector<8x128xf32>
    %cst_71 = arith.constant 1.000000e+00 : f32
    %226 = vector.broadcast %cst_71 : f32 to vector<8x128xf32>
    %227 = arith.addf %226, %225 : vector<8x128xf32>
    %228 = arith.divf %226, %227 : vector<8x128xf32>
    %229 = vector.extract_strided_slice %216 {offsets = [0, 256], sizes = [8, 128], strides = [1, 1]} : vector<8x512xf32> to vector<8x128xf32>
    %230 = math.tanh %229 : vector<8x128xf32>
    %231 = vector.extract_strided_slice %216 {offsets = [0, 384], sizes = [8, 128], strides = [1, 1]} : vector<8x512xf32> to vector<8x128xf32>
    %232 = arith.negf %231 : vector<8x128xf32>
    %233 = math.exp %232 : vector<8x128xf32>
    %cst_72 = arith.constant 1.000000e+00 : f32
    %234 = vector.broadcast %cst_72 : f32 to vector<8x128xf32>
    %235 = arith.addf %234, %233 : vector<8x128xf32>
    %236 = arith.divf %234, %235 : vector<8x128xf32>
    %237 = arith.mulf %228, %200 : vector<8x128xf32>
    %238 = arith.mulf %222, %230 : vector<8x128xf32>
    %239 = arith.addf %237, %238 : vector<8x128xf32>
    %240 = math.tanh %239 : vector<8x128xf32>
    %241 = arith.mulf %236, %240 : vector<8x128xf32>
    %242 = arith.index_cast %c5_i32 : i32 to index
    %c0_73 = arith.constant 0 : index
    %c0_74 = arith.constant 0 : index
    %243 = vector.load %arg3[%242, %c0_73, %c0_74] : memref<8x8x1xf32, #tpu.memory_space<vmem>>, vector<1x8x1xf32>
    %244 = vector.shape_cast %243 : vector<1x8x1xf32> to vector<8x1xf32>
    %245 = vector.broadcast %244 : vector<8x1xf32> to vector<8x128xf32>
    %246 = arith.mulf %245, %241 : vector<8x128xf32>
    %247 = arith.addf %208, %246 : vector<8x128xf32>
    %c6_i32 = arith.constant 6 : i32
    %c8_i32_75 = arith.constant 8 : i32
    %248 = arith.muli %c6_i32, %c8_i32_75 : i32
    %249 = tpu.assume_multiple %248, 8 : i32
    %250 = arith.index_cast %249 : i32 to index
    %c0_76 = arith.constant 0 : index
    %251 = vector.load %arg10[%250, %c0_76] : memref<64x512xf32, #tpu.memory_space<vmem>>, vector<8x512xf32>
    %252 = arith.truncf %241 : vector<8x128xf32> to vector<8x128xbf16>
    %c0_77 = arith.constant 0 : index
    %c0_78 = arith.constant 0 : index
    %253 = vector.load %arg6[%c0_77, %c0_78] : memref<128x512xbf16, #tpu.memory_space<vmem>>, vector<128x512xbf16>
    %cst_79 = arith.constant dense<0.000000e+00> : vector<8x512xf32>
    %254 = tpu.matmul %252, %253, %cst_79 {dimension_numbers = #tpu.dot_dimension_numbers<[1], [0], [0], [1], [0, 0, 1, 1], [], []>} : vector<8x128xbf16>, vector<128x512xbf16>, vector<8x512xf32> -> vector<8x512xf32>
    %255 = arith.addf %251, %254 : vector<8x512xf32>
    %256 = vector.extract_strided_slice %255 {offsets = [0, 0], sizes = [8, 128], strides = [1, 1]} : vector<8x512xf32> to vector<8x128xf32>
    %257 = arith.negf %256 : vector<8x128xf32>
    %258 = math.exp %257 : vector<8x128xf32>
    %cst_80 = arith.constant 1.000000e+00 : f32
    %259 = vector.broadcast %cst_80 : f32 to vector<8x128xf32>
    %260 = arith.addf %259, %258 : vector<8x128xf32>
    %261 = arith.divf %259, %260 : vector<8x128xf32>
    %262 = vector.extract_strided_slice %255 {offsets = [0, 128], sizes = [8, 128], strides = [1, 1]} : vector<8x512xf32> to vector<8x128xf32>
    %263 = arith.negf %262 : vector<8x128xf32>
    %264 = math.exp %263 : vector<8x128xf32>
    %cst_81 = arith.constant 1.000000e+00 : f32
    %265 = vector.broadcast %cst_81 : f32 to vector<8x128xf32>
    %266 = arith.addf %265, %264 : vector<8x128xf32>
    %267 = arith.divf %265, %266 : vector<8x128xf32>
    %268 = vector.extract_strided_slice %255 {offsets = [0, 256], sizes = [8, 128], strides = [1, 1]} : vector<8x512xf32> to vector<8x128xf32>
    %269 = math.tanh %268 : vector<8x128xf32>
    %270 = vector.extract_strided_slice %255 {offsets = [0, 384], sizes = [8, 128], strides = [1, 1]} : vector<8x512xf32> to vector<8x128xf32>
    %271 = arith.negf %270 : vector<8x128xf32>
    %272 = math.exp %271 : vector<8x128xf32>
    %cst_82 = arith.constant 1.000000e+00 : f32
    %273 = vector.broadcast %cst_82 : f32 to vector<8x128xf32>
    %274 = arith.addf %273, %272 : vector<8x128xf32>
    %275 = arith.divf %273, %274 : vector<8x128xf32>
    %276 = arith.mulf %267, %239 : vector<8x128xf32>
    %277 = arith.mulf %261, %269 : vector<8x128xf32>
    %278 = arith.addf %276, %277 : vector<8x128xf32>
    %279 = math.tanh %278 : vector<8x128xf32>
    %280 = arith.mulf %275, %279 : vector<8x128xf32>
    %281 = arith.index_cast %c6_i32 : i32 to index
    %c0_83 = arith.constant 0 : index
    %c0_84 = arith.constant 0 : index
    %282 = vector.load %arg3[%281, %c0_83, %c0_84] : memref<8x8x1xf32, #tpu.memory_space<vmem>>, vector<1x8x1xf32>
    %283 = vector.shape_cast %282 : vector<1x8x1xf32> to vector<8x1xf32>
    %284 = vector.broadcast %283 : vector<8x1xf32> to vector<8x128xf32>
    %285 = arith.mulf %284, %280 : vector<8x128xf32>
    %286 = arith.addf %247, %285 : vector<8x128xf32>
    %c7_i32 = arith.constant 7 : i32
    %c8_i32_85 = arith.constant 8 : i32
    %287 = arith.muli %c7_i32, %c8_i32_85 : i32
    %288 = tpu.assume_multiple %287, 8 : i32
    %289 = arith.index_cast %288 : i32 to index
    %c0_86 = arith.constant 0 : index
    %290 = vector.load %arg10[%289, %c0_86] : memref<64x512xf32, #tpu.memory_space<vmem>>, vector<8x512xf32>
    %291 = arith.truncf %280 : vector<8x128xf32> to vector<8x128xbf16>
    %c0_87 = arith.constant 0 : index
    %c0_88 = arith.constant 0 : index
    %292 = vector.load %arg6[%c0_87, %c0_88] : memref<128x512xbf16, #tpu.memory_space<vmem>>, vector<128x512xbf16>
    %cst_89 = arith.constant dense<0.000000e+00> : vector<8x512xf32>
    %293 = tpu.matmul %291, %292, %cst_89 {dimension_numbers = #tpu.dot_dimension_numbers<[1], [0], [0], [1], [0, 0, 1, 1], [], []>} : vector<8x128xbf16>, vector<128x512xbf16>, vector<8x512xf32> -> vector<8x512xf32>
    %294 = arith.addf %290, %293 : vector<8x512xf32>
    %295 = vector.extract_strided_slice %294 {offsets = [0, 0], sizes = [8, 128], strides = [1, 1]} : vector<8x512xf32> to vector<8x128xf32>
    %296 = arith.negf %295 : vector<8x128xf32>
    %297 = math.exp %296 : vector<8x128xf32>
    %cst_90 = arith.constant 1.000000e+00 : f32
    %298 = vector.broadcast %cst_90 : f32 to vector<8x128xf32>
    %299 = arith.addf %298, %297 : vector<8x128xf32>
    %300 = arith.divf %298, %299 : vector<8x128xf32>
    %301 = vector.extract_strided_slice %294 {offsets = [0, 128], sizes = [8, 128], strides = [1, 1]} : vector<8x512xf32> to vector<8x128xf32>
    %302 = arith.negf %301 : vector<8x128xf32>
    %303 = math.exp %302 : vector<8x128xf32>
    %cst_91 = arith.constant 1.000000e+00 : f32
    %304 = vector.broadcast %cst_91 : f32 to vector<8x128xf32>
    %305 = arith.addf %304, %303 : vector<8x128xf32>
    %306 = arith.divf %304, %305 : vector<8x128xf32>
    %307 = vector.extract_strided_slice %294 {offsets = [0, 256], sizes = [8, 128], strides = [1, 1]} : vector<8x512xf32> to vector<8x128xf32>
    %308 = math.tanh %307 : vector<8x128xf32>
    %309 = vector.extract_strided_slice %294 {offsets = [0, 384], sizes = [8, 128], strides = [1, 1]} : vector<8x512xf32> to vector<8x128xf32>
    %310 = arith.negf %309 : vector<8x128xf32>
    %311 = math.exp %310 : vector<8x128xf32>
    %cst_92 = arith.constant 1.000000e+00 : f32
    %312 = vector.broadcast %cst_92 : f32 to vector<8x128xf32>
    %313 = arith.addf %312, %311 : vector<8x128xf32>
    %314 = arith.divf %312, %313 : vector<8x128xf32>
    %315 = arith.mulf %306, %278 : vector<8x128xf32>
    %316 = arith.mulf %300, %308 : vector<8x128xf32>
    %317 = arith.addf %315, %316 : vector<8x128xf32>
    %318 = math.tanh %317 : vector<8x128xf32>
    %319 = arith.mulf %314, %318 : vector<8x128xf32>
    %320 = arith.index_cast %c7_i32 : i32 to index
    %c0_93 = arith.constant 0 : index
    %c0_94 = arith.constant 0 : index
    %321 = vector.load %arg3[%320, %c0_93, %c0_94] : memref<8x8x1xf32, #tpu.memory_space<vmem>>, vector<1x8x1xf32>
    %322 = vector.shape_cast %321 : vector<1x8x1xf32> to vector<8x1xf32>
    %323 = vector.broadcast %322 : vector<8x1xf32> to vector<8x128xf32>
    %324 = arith.mulf %323, %319 : vector<8x128xf32>
    %325 = arith.addf %286, %324 : vector<8x128xf32>
    %c8_i32_95 = arith.constant 8 : i32
    %c0_96 = arith.constant 0 : index
    %c0_97 = arith.constant 0 : index
    %326 = vector.load %arg11[%c0_96, %c0_97] : memref<8x128xf32, #tpu.memory_space<vmem>>, vector<8x128xf32>
    tpu.vector_store %arg11[%c0_96, %c0_97], %319 {strides = array<i32>} : memref<8x128xf32, #tpu.memory_space<vmem>>, vector<8x128xf32>,
    %c0_98 = arith.constant 0 : index
    %c0_99 = arith.constant 0 : index
    %327 = vector.load %arg12[%c0_98, %c0_99] : memref<8x128xf32, #tpu.memory_space<vmem>>, vector<8x128xf32>
    tpu.vector_store %arg12[%c0_98, %c0_99], %317 {strides = array<i32>} : memref<8x128xf32, #tpu.memory_space<vmem>>, vector<8x128xf32>,
    %c0_100 = arith.constant 0 : index
    %c0_101 = arith.constant 0 : index
    %328 = vector.load %arg13[%c0_100, %c0_101] : memref<8x128xf32, #tpu.memory_space<vmem>>, vector<8x128xf32>
    tpu.vector_store %arg13[%c0_100, %c0_101], %325 {strides = array<i32>} : memref<8x128xf32, #tpu.memory_space<vmem>>, vector<8x128xf32>,
    %c0_i32_102 = arith.constant 0 : i32
    %329 = arith.cmpi eq, %arg1, %c0_i32_102 : i32
    %330 = arith.extui %329 : i1 to i32
    %c0_i32_103 = arith.constant 0 : i32
    %331 = arith.cmpi ne, %330, %c0_i32_103 : i32
    scf.if %331 {
      %c0_104 = arith.constant 0 : index
      %c0_105 = arith.constant 0 : index
      %332 = vector.load %arg13[%c0_104, %c0_105] : memref<8x128xf32, #tpu.memory_space<vmem>>, vector<8x128xf32>
      %c0_106 = arith.constant 0 : index
      %c0_107 = arith.constant 0 : index
      %333 = vector.load %arg7[%c0_106, %c0_107] : memref<128x128xf32, #tpu.memory_space<vmem>>, vector<128x128xf32>
      %cst_108 = arith.constant dense<0.000000e+00> : vector<8x128xf32>
      %334 = tpu.matmul %332, %333, %cst_108 {dimension_numbers = #tpu.dot_dimension_numbers<[1], [0], [0], [1], [0, 0, 1, 1], [], []>} : vector<8x128xf32>, vector<128x128xf32>, vector<8x128xf32> -> vector<8x128xf32>
      %c0_109 = arith.constant 0 : index
      %c0_110 = arith.constant 0 : index
      %335 = vector.load %arg8[%c0_109, %c0_110] : memref<1x128xf32, #tpu.memory_space<vmem>>, vector<1x128xf32>
      %336 = vector.broadcast %335 : vector<1x128xf32> to vector<8x128xf32>
      %337 = arith.addf %334, %336 : vector<8x128xf32>
      %c0_111 = arith.constant 0 : index
      %c0_112 = arith.constant 0 : index
      %338 = vector.load %arg9[%c0_111, %c0_112] : memref<8x128xf32, #tpu.memory_space<vmem>>, vector<8x128xf32>
      tpu.vector_store %arg9[%c0_111, %c0_112], %337 {strides = array<i32>} : memref<8x128xf32, #tpu.memory_space<vmem>>, vector<8x128xf32>,
    } else {
    }
    return
  }
  func.func @transform_0(%arg0: i32, %arg1: i32) -> (i32, i32, i32) {
    %c0_i32 = arith.constant 0 : i32
    %c0_i32_0 = arith.constant 0 : i32
    return %arg0, %arg1, %c0_i32 : i32, i32, i32
  }
  func.func @transform_1(%arg0: i32, %arg1: i32) -> (i32, i32, i32) {
    %c0_i32 = arith.constant 0 : i32
    %c0_i32_0 = arith.constant 0 : i32
    return %arg1, %arg0, %c0_i32 : i32, i32, i32
  }
  func.func @transform_2(%arg0: i32, %arg1: i32) -> (i32, i32) {
    %c0_i32 = arith.constant 0 : i32
    %c0_i32_0 = arith.constant 0 : i32
    %c0_i32_1 = arith.constant 0 : i32
    return %c0_i32, %c0_i32_0 : i32, i32
  }
  func.func @transform_3(%arg0: i32, %arg1: i32) -> (i32, i32) {
    %c0_i32 = arith.constant 0 : i32
    %c0_i32_0 = arith.constant 0 : i32
    %c0_i32_1 = arith.constant 0 : i32
    return %c0_i32, %c0_i32_0 : i32, i32
  }
  func.func @transform_4(%arg0: i32, %arg1: i32) -> (i32, i32) {
    %c0_i32 = arith.constant 0 : i32
    %c0_i32_0 = arith.constant 0 : i32
    %c0_i32_1 = arith.constant 0 : i32
    return %c0_i32, %c0_i32_0 : i32, i32
  }
  func.func @transform_5(%arg0: i32, %arg1: i32) -> (i32, i32) {
    %c0_i32 = arith.constant 0 : i32
    %c0_i32_0 = arith.constant 0 : i32
    %c0_i32_1 = arith.constant 0 : i32
    return %c0_i32, %c0_i32_0 : i32, i32
  }
  func.func @transform_6(%arg0: i32, %arg1: i32) -> (i32, i32) {
    %c0_i32 = arith.constant 0 : i32
    %c0_i32_0 = arith.constant 0 : i32
    %c0_i32_1 = arith.constant 0 : i32
    return %c0_i32, %c0_i32_0 : i32, i32
  }
  func.func @transform_7(%arg0: i32, %arg1: i32) -> (i32, i32) {
    %c0_i32 = arith.constant 0 : i32
    %c0_i32_0 = arith.constant 0 : i32
    return %arg0, %c0_i32 : i32, i32
  }
}

</mosaic_0001>

<llo_original>
// kernel: lstm_classifier_forward.1
$region0: #{lstm_classifier_forward.1}
  #allocation0 [shape = 'u32[]', space=smem, size = 0x4, offset = 0x4, fixed_abs, tag = 'smem constant byte address 0x4 - core index']
  #allocation1 [shape = 'u32[144,128]{1,0:T(1,128)}', space=vmem, size = 0x12000, scoped, tag = 'internal scratch']
  #allocation2 [shape = 'f32[64,512]{1,0:T(8,128)}', space=vmem, size = 0x20000, scoped, tag = 'scratch operand']
  #allocation3 [shape = 'f32[8,128]{1,0:T(8,128)}', space=vmem, size = 0x1000, scoped, tag = 'scratch operand']
  #allocation4 [shape = 'f32[8,128]{1,0:T(8,128)}', space=vmem, size = 0x1000, scoped, tag = 'scratch operand']
  #allocation5 [shape = 'f32[8,128]{1,0:T(8,128)}', space=vmem, size = 0x1000, scoped, tag = 'scratch operand']
  %s0 = inlined_call_operand.vmem [shape: bf16[1,64,128], index: 0, kind: input, shape index: {}]
  %s1 = inlined_call_operand.vmem [shape: f32[8,8,1], index: 1, kind: input, shape index: {}]
  %s2 = inlined_call_operand.vmem [shape: bf16[128,512], index: 2, kind: input, shape index: {}]
  %s3 = inlined_call_operand.vmem [shape: f32[1,512], index: 3, kind: input, shape index: {}]
  %s4 = inlined_call_operand.vmem [shape: bf16[128,512], index: 4, kind: input, shape index: {}]
  %s5 = inlined_call_operand.hbm [shape: f32[128,128], index: 5, kind: input, shape index: {}]
  %s6 = inlined_call_operand.vmem [shape: f32[1,128], index: 6, kind: input, shape index: {}]
  %s7 = inlined_call_operand.vmem [shape: f32[8,128], index: 7, kind: output, shape index: {}]
  %s8 = sld [smem:[#allocation0]]
  $region50: #{lstm_classifier_forward.1} parent=0
    _
  %s10 = ssub.s32 1, %s8
  %s11 = scalar_select 0, %s10, %s8
  $region1: #{lstm_classifier_forward.1} parent=0
    #allocation6 [shape = 'u8[65536]{0}', space=vmem, size = 0x10000, scoped, tag = 'input window, operand 5, single buffered']
    #allocation7 [shape = 's32[1]{0}', space=sflag, size = 0x4, scoped, tag = 'scoped memory for lstm_classifier_forward.1']
    %12 = vsyncpa [#allocation7], 0
    // Predicated region
    $region2: #{lstm_classifier_forward.1} parent=1 // pred_check
      _
    $region3: #{lstm_classifier_forward.1} parent=1 // pred_check_branch
      %14 = sbr.rel (0) target = $region5
    $region4: #{lstm_classifier_forward.1} parent=1 // pred_region
      _
    $region5: #{lstm_classifier_forward.1} parent=1 // pred_fallthru
      _
    // Predicated region
    $region6: #{lstm_classifier_forward.1} parent=1 // pred_check
      _
    $region7: #{lstm_classifier_forward.1} parent=1 // pred_check_branch
      %16 = sbr.rel (0) target = $region9
    $region8: #{lstm_classifier_forward.1} parent=1 // pred_region
      _
    $region9: #{lstm_classifier_forward.1} parent=1 // pred_fallthru
      _
    // Predicated region
    $region10: #{lstm_classifier_forward.1} parent=1 // pred_check
      _
    $region11: #{lstm_classifier_forward.1} parent=1 // pred_check_branch
      %18 = sbr.rel (0) target = $region13
    $region12: #{lstm_classifier_forward.1} parent=1 // pred_region
      _
    $region13: #{lstm_classifier_forward.1} parent=1 // pred_fallthru
      _
    // Predicated region
    $region14: #{lstm_classifier_forward.1} parent=1 // pred_check
      _
    $region15: #{lstm_classifier_forward.1} parent=1 // pred_check_branch
      %20 = sbr.rel (0) target = $region17
    $region16: #{lstm_classifier_forward.1} parent=1 // pred_region
      _
    $region17: #{lstm_classifier_forward.1} parent=1 // pred_fallthru
      _
    // Predicated region
    $region18: #{lstm_classifier_forward.1} parent=1 // pred_check
      _
    $region19: #{lstm_classifier_forward.1} parent=1 // pred_check_branch
      %22 = sbr.rel (0) target = $region21
    $region20: #{lstm_classifier_forward.1} parent=1 // pred_region
      _
    $region21: #{lstm_classifier_forward.1} parent=1 // pred_fallthru
      _
    // Predicated region
    $region22: #{lstm_classifier_forward.1} parent=1 // pred_check
      _
    $region23: #{lstm_classifier_forward.1} parent=1 // pred_check_branch
      %24 = sbr.rel (0) target = $region25
    $region24: #{lstm_classifier_forward.1} parent=1 // pred_region
      %s26 = ssub.s32 2048, 2048
      %27 = vsyncadd [#allocation7], %s26
      %s28 = sshll.u32 [#allocation6], 4
      %s29 = int_to_ptr.vmem [resolvable:$true] %s28
      %34 = dma.hbm_to_vmem [thread:$0]  %s5, 2048, %s29, [#allocation7], 128, 128, 8
    $region25: #{lstm_classifier_forward.1} parent=1 // pred_fallthru
      _
    // Predicated region
    $region26: #{lstm_classifier_forward.1} parent=1 // pred_check
      _
    $region27: #{lstm_classifier_forward.1} parent=1 // pred_check_branch
      %36 = sbr.rel (0) target = $region29
    $region28: #{lstm_classifier_forward.1} parent=1 // pred_region
      _
    $region29: #{lstm_classifier_forward.1} parent=1 // pred_fallthru
      _
    // Predicated region
    $region30: #{lstm_classifier_forward.1} parent=1 // pred_check
      _
    $region31: #{lstm_classifier_forward.1} parent=1 // pred_check_branch
      %38 = sbr.rel (0) target = $region33
    $region32: #{lstm_classifier_forward.1} parent=1 // pred_region
      %39 = dma.done [#allocation7], 2048
    $region33: #{lstm_classifier_forward.1} parent=1 // pred_fallthru
      _
    %p41 = scmp.eq.s32.totalorder 0, 0
    // Predicated region
    $region34: #{lstm_classifier_forward.1} parent=1 // pred_check
      %p42 = pneg %p41
    $region35: #{lstm_classifier_forward.1} parent=1 // pred_check_branch
      %44 = sbr.rel (%p42) target = $region37
    $region36: #{lstm_classifier_forward.1} parent=1 // pred_region
      %45 = vst [vmem:[#allocation3] sm:$0xff] 0.0
      %46 = vst [vmem:[#allocation4] sm:$0xff] 0.0
      %47 = vst [vmem:[#allocation5] sm:$0xff] 0.0
    $region37: #{lstm_classifier_forward.1} parent=1 // pred_fallthru
      _
    %v48 = vld [vmem:[%s0] sm:$0xf]
    %v49 = vld [vmem:[%s0 + $0x4] sm:$0xf]
    %v50 = vld [vmem:[%s0 + $0x8] sm:$0xf]
    %v51 = vld [vmem:[%s0 + $0xc] sm:$0xf]
    %v52 = vld [vmem:[%s0 + $0x10] sm:$0xf]
    %v53 = vld [vmem:[%s0 + $0x14] sm:$0xf]
    %v54 = vld [vmem:[%s0 + $0x18] sm:$0xf]
    %v55 = vld [vmem:[%s0 + $0x1c] sm:$0xf]
    %v56 = vld [vmem:[%s2] sm:$0xff]
    %v57 = vld [vmem:[%s2 + $0x8] sm:$0xff]
    %v58 = vld [vmem:[%s2 + $0x10] sm:$0xff]
    %v59 = vld [vmem:[%s2 + $0x18] sm:$0xff]
    %v60 = vld [vmem:[%s2 + $0x20] sm:$0xff]
    %v61 = vld [vmem:[%s2 + $0x28] sm:$0xff]
    %v62 = vld [vmem:[%s2 + $0x30] sm:$0xff]
    %v63 = vld [vmem:[%s2 + $0x38] sm:$0xff]
    %v64 = vld [vmem:[%s2 + $0x40] sm:$0xff]
    %v65 = vld [vmem:[%s2 + $0x48] sm:$0xff]
    %v66 = vld [vmem:[%s2 + $0x50] sm:$0xff]
    %v67 = vld [vmem:[%s2 + $0x58] sm:$0xff]
    %v68 = vld [vmem:[%s2 + $0x60] sm:$0xff]
    %v69 = vld [vmem:[%s2 + $0x68] sm:$0xff]
    %v70 = vld [vmem:[%s2 + $0x70] sm:$0xff]
    %v71 = vld [vmem:[%s2 + $0x78] sm:$0xff]
    %v72 = vld [vmem:[%s2 + $0x80] sm:$0xff]
    %v73 = vld [vmem:[%s2 + $0x88] sm:$0xff]
    %v74 = vld [vmem:[%s2 + $0x90] sm:$0xff]
    %v75 = vld [vmem:[%s2 + $0x98] sm:$0xff]
    %v76 = vld [vmem:[%s2 + $0xa0] sm:$0xff]
    %v77 = vld [vmem:[%s2 + $0xa8] sm:$0xff]
    %v78 = vld [vmem:[%s2 + $0xb0] sm:$0xff]
    %v79 = vld [vmem:[%s2 + $0xb8] sm:$0xff]
    %v80 = vld [vmem:[%s2 + $0xc0] sm:$0xff]
    %v81 = vld [vmem:[%s2 + $0xc8] sm:$0xff]
    %v82 = vld [vmem:[%s2 + $0xd0] sm:$0xff]
    %v83 = vld [vmem:[%s2 + $0xd8] sm:$0xff]
    %v84 = vld [vmem:[%s2 + $0xe0] sm:$0xff]
    %v85 = vld [vmem:[%s2 + $0xe8] sm:$0xff]
    %v86 = vld [vmem:[%s2 + $0xf0] sm:$0xff]
    %v87 = vld [vmem:[%s2 + $0xf8] sm:$0xff]
    %v88 = vld [vmem:[%s3] sm:$0xf]
    %v90 = vlaneseq
    %v91 = vshrl.u32 %v90, 7
    %v92 = vsub.s32 0, %v91
    %v93 = vrot.slane %v88, %v92
    %v94 = vlaneseq
    %v95 = vshrl.u32 %v94, 7
    %v96 = vsub.s32 1, %v95
    %v97 = vrot.slane %v88, %v96
    %v98 = vlaneseq
    %v99 = vshrl.u32 %v98, 7
    %v100 = vsub.s32 2, %v99
    %v101 = vrot.slane %v88, %v100
    %v102 = vlaneseq
    %v103 = vshrl.u32 %v102, 7
    %v104 = vsub.s32 3, %v103
    %v105 = vrot.slane %v88, %v104
    %v118 = vunpack.c.l.b16 %v48
    %v119 = vunpack.c.l.b16 %v49
    %v120 = vunpack.c.l.b16 %v50
    %v121 = vunpack.c.l.b16 %v51
    %v122 = vunpack.c.l.b16 %v52
    %v123 = vunpack.c.l.b16 %v53
    %v124 = vunpack.c.l.b16 %v54
    %v125 = vunpack.c.l.b16 %v55
    %v126 = vpack.c.b16 %v119, %v118
    %v127 = vpack.c.b16 %v121, %v120
    %v128 = vpack.c.b16 %v123, %v122
    %v129 = vpack.c.b16 %v125, %v124
    %v166 = vunpack.c.l.b16 %v56
    %v167 = vunpack.c.h.b16 %v56
    %v168 = vunpack.c.l.b16 %v57
    %v169 = vunpack.c.h.b16 %v57
    %v170 = vunpack.c.l.b16 %v58
    %v171 = vunpack.c.h.b16 %v58
    %v172 = vunpack.c.l.b16 %v59
    %v173 = vunpack.c.h.b16 %v59
    %v174 = vunpack.c.l.b16 %v60
    %v175 = vunpack.c.h.b16 %v60
    %v176 = vunpack.c.l.b16 %v61
    %v177 = vunpack.c.h.b16 %v61
    %v178 = vunpack.c.l.b16 %v62
    %v179 = vunpack.c.h.b16 %v62
    %v180 = vunpack.c.l.b16 %v63
    %v181 = vunpack.c.h.b16 %v63
    %v182 = vunpack.c.l.b16 %v64
    %v183 = vunpack.c.h.b16 %v64
    %v184 = vunpack.c.l.b16 %v65
    %v185 = vunpack.c.h.b16 %v65
    %v186 = vunpack.c.l.b16 %v66
    %v187 = vunpack.c.h.b16 %v66
    %v188 = vunpack.c.l.b16 %v67
    %v189 = vunpack.c.h.b16 %v67
    %v190 = vunpack.c.l.b16 %v68
    %v191 = vunpack.c.h.b16 %v68
    %v192 = vunpack.c.l.b16 %v69
    %v193 = vunpack.c.h.b16 %v69
    %v194 = vunpack.c.l.b16 %v70
    %v195 = vunpack.c.h.b16 %v70
    %v196 = vunpack.c.l.b16 %v71
    %v197 = vunpack.c.h.b16 %v71
    %v198 = vunpack.c.l.b16 %v72
    %v199 = vunpack.c.h.b16 %v72
    %v200 = vunpack.c.l.b16 %v73
    %v201 = vunpack.c.h.b16 %v73
    %v202 = vunpack.c.l.b16 %v74
    %v203 = vunpack.c.h.b16 %v74
    %v204 = vunpack.c.l.b16 %v75
    %v205 = vunpack.c.h.b16 %v75
    %v206 = vunpack.c.l.b16 %v76
    %v207 = vunpack.c.h.b16 %v76
    %v208 = vunpack.c.l.b16 %v77
    %v209 = vunpack.c.h.b16 %v77
    %v210 = vunpack.c.l.b16 %v78
    %v211 = vunpack.c.h.b16 %v78
    %v212 = vunpack.c.l.b16 %v79
    %v213 = vunpack.c.h.b16 %v79
    %v214 = vunpack.c.l.b16 %v80
    %v215 = vunpack.c.h.b16 %v80
    %v216 = vunpack.c.l.b16 %v81
    %v217 = vunpack.c.h.b16 %v81
    %v218 = vunpack.c.l.b16 %v82
    %v219 = vunpack.c.h.b16 %v82
    %v220 = vunpack.c.l.b16 %v83
    %v221 = vunpack.c.h.b16 %v83
    %v222 = vunpack.c.l.b16 %v84
    %v223 = vunpack.c.h.b16 %v84
    %v224 = vunpack.c.l.b16 %v85
    %v225 = vunpack.c.h.b16 %v85
    %v226 = vunpack.c.l.b16 %v86
    %v227 = vunpack.c.h.b16 %v86
    %v228 = vunpack.c.l.b16 %v87
    %v229 = vunpack.c.h.b16 %v87
    %v230 = vpack.c.b16 %v170, %v166
    %v231 = vpack.c.b16 %v171, %v167
    %v232 = vpack.c.b16 %v172, %v168
    %v233 = vpack.c.b16 %v173, %v169
    %v234 = vpack.c.b16 %v178, %v174
    %v235 = vpack.c.b16 %v179, %v175
    %v236 = vpack.c.b16 %v180, %v176
    %v237 = vpack.c.b16 %v181, %v177
    %v238 = vpack.c.b16 %v186, %v182
    %v239 = vpack.c.b16 %v187, %v183
    %v240 = vpack.c.b16 %v188, %v184
    %v241 = vpack.c.b16 %v189, %v185
    %v242 = vpack.c.b16 %v194, %v190
    %v243 = vpack.c.b16 %v195, %v191
    %v244 = vpack.c.b16 %v196, %v192
    %v245 = vpack.c.b16 %v197, %v193
    %v246 = vpack.c.b16 %v202, %v198
    %v247 = vpack.c.b16 %v203, %v199
    %v248 = vpack.c.b16 %v204, %v200
    %v249 = vpack.c.b16 %v205, %v201
    %v250 = vpack.c.b16 %v210, %v206
    %v251 = vpack.c.b16 %v211, %v207
    %v252 = vpack.c.b16 %v212, %v208
    %v253 = vpack.c.b16 %v213, %v209
    %v254 = vpack.c.b16 %v218, %v214
    %v255 = vpack.c.b16 %v219, %v215
    %v256 = vpack.c.b16 %v220, %v216
    %v257 = vpack.c.b16 %v221, %v217
    %v258 = vpack.c.b16 %v226, %v222
    %v259 = vpack.c.b16 %v227, %v223
    %v260 = vpack.c.b16 %v228, %v224
    %v261 = vpack.c.b16 %v229, %v225
    %294 = vmatprep.subr.bf16.mxu0 %v231
    %295 = vmatpush1.bf16.msra.mxu0 %v230
    %296 = vmatprep.subr.bf16.mxu0 %v235
    %297 = vmatpush1.bf16.msra.mxu0 %v234
    %298 = vmatprep.subr.bf16.mxu0 %v239
    %299 = vmatpush1.bf16.msra.mxu0 %v238
    %300 = vmatprep.subr.bf16.mxu0 %v243
    %301 = vmatpush1.bf16.msra.mxu0 %v242
    %302 = vmatprep.subr.bf16.mxu0 %v247
    %303 = vmatpush1.bf16.msra.mxu0 %v246
    %304 = vmatprep.subr.bf16.mxu0 %v251
    %305 = vmatpush1.bf16.msra.mxu0 %v250
    %306 = vmatprep.subr.bf16.mxu0 %v255
    %307 = vmatpush1.bf16.msra.mxu0 %v254
    %308 = vmatprep.subr.bf16.mxu0 %v259
    %309 = vmatpush1.bf16.msra.mxu0 %v258
    %310 = vmatprep.subr.bf16.mxu0 0
    %311 = vmatpush1.bf16.msra.mxu0 0
    %312 = vmatprep.subr.bf16.mxu0 0
    %313 = vmatpush1.bf16.msra.mxu0 0
    %314 = vmatprep.subr.bf16.mxu0 0
    %315 = vmatpush1.bf16.msra.mxu0 0
    %316 = vmatprep.subr.bf16.mxu0 0
    %317 = vmatpush1.bf16.msra.mxu0 0
    %318 = vmatprep.subr.bf16.mxu0 0
    %319 = vmatpush1.bf16.msra.mxu0 0
    %320 = vmatprep.subr.bf16.mxu0 0
    %321 = vmatpush1.bf16.msra.mxu0 0
    %322 = vmatprep.subr.bf16.mxu0 0
    %323 = vmatpush1.bf16.msra.mxu0 0
    %324 = vmatprep.subr.bf16.mxu0 0
    %325 = vmatpush1.bf16.msra.mxu0 0
    %326 = vmatprep.mubr.bf16.mxu0 0
    %327 = vmatmul.mubr.bf16.gmra.mrb[0].mxu0 %v126
    %v328 = vpop.f32.mrb[0].mxu0
    %v329 = vadd.f32 %v93, %v328
    %v330 = vpop.f32.mrb[0].mxu0
    %v331 = vadd.f32 %v97, %v330
    %v332 = vpop.f32.mrb[0].mxu0
    %v333 = vadd.f32 %v93, %v332
    %v334 = vpop.f32.mrb[0].mxu0
    %v335 = vadd.f32 %v97, %v334
    %336 = vmatprep.mubr.bf16.mxu0 0
    %337 = vmatmul.mubr.bf16.gmra.mrb[0].mxu0 %v127
    %v338 = vpop.f32.mrb[0].mxu0
    %v339 = vadd.f32 %v93, %v338
    %v340 = vpop.f32.mrb[0].mxu0
    %v341 = vadd.f32 %v97, %v340
    %v342 = vpop.f32.mrb[0].mxu0
    %v343 = vadd.f32 %v93, %v342
    %v344 = vpop.f32.mrb[0].mxu0
    %v345 = vadd.f32 %v97, %v344
    %346 = vmatprep.mubr.bf16.mxu0 0
    %347 = vmatmul.mubr.bf16.gmra.mrb[0].mxu0 %v128
    %v348 = vpop.f32.mrb[0].mxu0
    %v349 = vadd.f32 %v93, %v348
    %v350 = vpop.f32.mrb[0].mxu0
    %v351 = vadd.f32 %v97, %v350
    %v352 = vpop.f32.mrb[0].mxu0
    %v353 = vadd.f32 %v93, %v352
    %v354 = vpop.f32.mrb[0].mxu0
    %v355 = vadd.f32 %v97, %v354
    %356 = vmatprep.mubr.bf16.mxu0 0
    %357 = vmatmul.mubr.bf16.gmra.mrb[0].mxu0 %v129
    %v358 = vpop.f32.mrb[0].mxu0
    %v359 = vadd.f32 %v93, %v358
    %v360 = vpop.f32.mrb[0].mxu0
    %v361 = vadd.f32 %v97, %v360
    %v362 = vpop.f32.mrb[0].mxu0
    %v363 = vadd.f32 %v93, %v362
    %v364 = vpop.f32.mrb[0].mxu0
    %v365 = vadd.f32 %v97, %v364
    %366 = vdwg.mxu0
    %367 = vmatprep.subr.bf16.mxu0 %v233
    %368 = vmatpush1.bf16.msra.mxu0 %v232
    %369 = vmatprep.subr.bf16.mxu0 %v237
    %370 = vmatpush1.bf16.msra.mxu0 %v236
    %371 = vmatprep.subr.bf16.mxu0 %v241
    %372 = vmatpush1.bf16.msra.mxu0 %v240
    %373 = vmatprep.subr.bf16.mxu0 %v245
    %374 = vmatpush1.bf16.msra.mxu0 %v244
    %375 = vmatprep.subr.bf16.mxu0 %v249
    %376 = vmatpush1.bf16.msra.mxu0 %v248
    %377 = vmatprep.subr.bf16.mxu0 %v253
    %378 = vmatpush1.bf16.msra.mxu0 %v252
    %379 = vmatprep.subr.bf16.mxu0 %v257
    %380 = vmatpush1.bf16.msra.mxu0 %v256
    %381 = vmatprep.subr.bf16.mxu0 %v261
    %382 = vmatpush1.bf16.msra.mxu0 %v260
    %383 = vmatprep.subr.bf16.mxu0 0
    %384 = vmatpush1.bf16.msra.mxu0 0
    %385 = vmatprep.subr.bf16.mxu0 0
    %386 = vmatpush1.bf16.msra.mxu0 0
    %387 = vmatprep.subr.bf16.mxu0 0
    %388 = vmatpush1.bf16.msra.mxu0 0
    %389 = vmatprep.subr.bf16.mxu0 0
    %390 = vmatpush1.bf16.msra.mxu0 0
    %391 = vmatprep.subr.bf16.mxu0 0
    %392 = vmatpush1.bf16.msra.mxu0 0
    %393 = vmatprep.subr.bf16.mxu0 0
    %394 = vmatpush1.bf16.msra.mxu0 0
    %395 = vmatprep.subr.bf16.mxu0 0
    %396 = vmatpush1.bf16.msra.mxu0 0
    %397 = vmatprep.subr.bf16.mxu0 0
    %398 = vmatpush1.bf16.msra.mxu0 0
    %399 = vmatprep.mubr.bf16.mxu0 0
    %400 = vmatmul.mubr.bf16.gmra.mrb[0].mxu0 %v126
    %v401 = vpop.f32.mrb[0].mxu0
    %v402 = vadd.f32 %v101, %v401
    %v403 = vpop.f32.mrb[0].mxu0
    %v404 = vadd.f32 %v105, %v403
    %v405 = vpop.f32.mrb[0].mxu0
    %v406 = vadd.f32 %v101, %v405
    %v407 = vpop.f32.mrb[0].mxu0
    %v408 = vadd.f32 %v105, %v407
    %409 = vmatprep.mubr.bf16.mxu0 0
    %410 = vmatmul.mubr.bf16.gmra.mrb[0].mxu0 %v127
    %v411 = vpop.f32.mrb[0].mxu0
    %v412 = vadd.f32 %v101, %v411
    %v413 = vpop.f32.mrb[0].mxu0
    %v414 = vadd.f32 %v105, %v413
    %v415 = vpop.f32.mrb[0].mxu0
    %v416 = vadd.f32 %v101, %v415
    %v417 = vpop.f32.mrb[0].mxu0
    %v418 = vadd.f32 %v105, %v417
    %419 = vmatprep.mubr.bf16.mxu0 0
    %420 = vmatmul.mubr.bf16.gmra.mrb[0].mxu0 %v128
    %v421 = vpop.f32.mrb[0].mxu0
    %v422 = vadd.f32 %v101, %v421
    %v423 = vpop.f32.mrb[0].mxu0
    %v424 = vadd.f32 %v105, %v423
    %v425 = vpop.f32.mrb[0].mxu0
    %v426 = vadd.f32 %v101, %v425
    %v427 = vpop.f32.mrb[0].mxu0
    %v428 = vadd.f32 %v105, %v427
    %429 = vmatprep.mubr.bf16.mxu0 0
    %430 = vmatmul.mubr.bf16.gmra.mrb[0].mxu0 %v129
    %v431 = vpop.f32.mrb[0].mxu0
    %v432 = vadd.f32 %v101, %v431
    %v433 = vpop.f32.mrb[0].mxu0
    %v434 = vadd.f32 %v105, %v433
    %v435 = vpop.f32.mrb[0].mxu0
    %v436 = vadd.f32 %v101, %v435
    %v437 = vpop.f32.mrb[0].mxu0
    %v438 = vadd.f32 %v105, %v437
    %439 = vdwg.mxu0
    %440 = vst [vmem:[#allocation2] sm:$0xff] %v329
    %441 = vst [vmem:[#allocation2 + $0x8] sm:$0xff] %v331
    %442 = vst [vmem:[#allocation2 + $0x10] sm:$0xff] %v402
    %443 = vst [vmem:[#allocation2 + $0x18] sm:$0xff] %v404
    %444 = vst [vmem:[#allocation2 + $0x20] sm:$0xff] %v333
    %445 = vst [vmem:[#allocation2 + $0x28] sm:$0xff] %v335
    %446 = vst [vmem:[#allocation2 + $0x30] sm:$0xff] %v406
    %447 = vst [vmem:[#allocation2 + $0x38] sm:$0xff] %v408
    %448 = vst [vmem:[#allocation2 + $0x40] sm:$0xff] %v339
    %449 = vst [vmem:[#allocation2 + $0x48] sm:$0xff] %v341
    %450 = vst [vmem:[#allocation2 + $0x50] sm:$0xff] %v412
    %451 = vst [vmem:[#allocation2 + $0x58] sm:$0xff] %v414
    %452 = vst [vmem:[#allocation2 + $0x60] sm:$0xff] %v343
    %453 = vst [vmem:[#allocation2 + $0x68] sm:$0xff] %v345
    %454 = vst [vmem:[#allocation2 + $0x70] sm:$0xff] %v416
    %455 = vst [vmem:[#allocation2 + $0x78] sm:$0xff] %v418
    %456 = vst [vmem:[#allocation2 + $0x80] sm:$0xff] %v349
    %457 = vst [vmem:[#allocation2 + $0x88] sm:$0xff] %v351
    %458 = vst [vmem:[#allocation2 + $0x90] sm:$0xff] %v422
    %459 = vst [vmem:[#allocation2 + $0x98] sm:$0xff] %v424
    %460 = vst [vmem:[#allocation2 + $0xa0] sm:$0xff] %v353
    %461 = vst [vmem:[#allocation2 + $0xa8] sm:$0xff] %v355
    %462 = vst [vmem:[#allocation2 + $0xb0] sm:$0xff] %v426
    %463 = vst [vmem:[#allocation2 + $0xb8] sm:$0xff] %v428
    %464 = vst [vmem:[#allocation2 + $0xc0] sm:$0xff] %v359
    %465 = vst [vmem:[#allocation2 + $0xc8] sm:$0xff] %v361
    %466 = vst [vmem:[#allocation2 + $0xd0] sm:$0xff] %v432
    %467 = vst [vmem:[#allocation2 + $0xd8] sm:$0xff] %v434
    %468 = vst [vmem:[#allocation2 + $0xe0] sm:$0xff] %v363
    %469 = vst [vmem:[#allocation2 + $0xe8] sm:$0xff] %v365
    %470 = vst [vmem:[#allocation2 + $0xf0] sm:$0xff] %v436
    %471 = vst [vmem:[#allocation2 + $0xf8] sm:$0xff] %v438
    %v472 = vld [vmem:[#allocation3] sm:$0xff]
    %v473 = vld [vmem:[#allocation4] sm:$0xff]
    %v474 = vld [vmem:[#allocation5] sm:$0xff]
    %s475 = smul.u32 0, 4
    %s476 = smul.addr %s475, 8
    %s477 = scalar_lea.vmem [#allocation2], %s476
    %v478 = vld [vmem:[%s477] sm:$0xff]
    %v479 = vld [vmem:[%s477 + $0x8] sm:$0xff]
    %v480 = vld [vmem:[%s477 + $0x10] sm:$0xff]
    %v481 = vld [vmem:[%s477 + $0x18] sm:$0xff]
    %v482 = vpack.c.bf16 %v472, %v472
    %v483 = vld [vmem:[%s4] sm:$0xff]
    %v484 = vld [vmem:[%s4 + $0x8] sm:$0xff]
    %v485 = vld [vmem:[%s4 + $0x10] sm:$0xff]
    %v486 = vld [vmem:[%s4 + $0x18] sm:$0xff]
    %v487 = vld [vmem:[%s4 + $0x20] sm:$0xff]
    %v488 = vld [vmem:[%s4 + $0x28] sm:$0xff]
    %v489 = vld [vmem:[%s4 + $0x30] sm:$0xff]
    %v490 = vld [vmem:[%s4 + $0x38] sm:$0xff]
    %v491 = vld [vmem:[%s4 + $0x40] sm:$0xff]
    %v492 = vld [vmem:[%s4 + $0x48] sm:$0xff]
    %v493 = vld [vmem:[%s4 + $0x50] sm:$0xff]
    %v494 = vld [vmem:[%s4 + $0x58] sm:$0xff]
    %v495 = vld [vmem:[%s4 + $0x60] sm:$0xff]
    %v496 = vld [vmem:[%s4 + $0x68] sm:$0xff]
    %v497 = vld [vmem:[%s4 + $0x70] sm:$0xff]
    %v498 = vld [vmem:[%s4 + $0x78] sm:$0xff]
    %v499 = vld [vmem:[%s4 + $0x80] sm:$0xff]
    %v500 = vld [vmem:[%s4 + $0x88] sm:$0xff]
    %v501 = vld [vmem:[%s4 + $0x90] sm:$0xff]
    %v502 = vld [vmem:[%s4 + $0x98] sm:$0xff]
    %v503 = vld [vmem:[%s4 + $0xa0] sm:$0xff]
    %v504 = vld [vmem:[%s4 + $0xa8] sm:$0xff]
    %v505 = vld [vmem:[%s4 + $0xb0] sm:$0xff]
    %v506 = vld [vmem:[%s4 + $0xb8] sm:$0xff]
    %v507 = vld [vmem:[%s4 + $0xc0] sm:$0xff]
    %v508 = vld [vmem:[%s4 + $0xc8] sm:$0xff]
    %v509 = vld [vmem:[%s4 + $0xd0] sm:$0xff]
    %v510 = vld [vmem:[%s4 + $0xd8] sm:$0xff]
    %v511 = vld [vmem:[%s4 + $0xe0] sm:$0xff]
    %v512 = vld [vmem:[%s4 + $0xe8] sm:$0xff]
    %v513 = vld [vmem:[%s4 + $0xf0] sm:$0xff]
    %v514 = vld [vmem:[%s4 + $0xf8] sm:$0xff]
    %v547 = vunpack.c.l.b16 %v483
    %v548 = vunpack.c.h.b16 %v483
    %v549 = vunpack.c.l.b16 %v484
    %v550 = vunpack.c.h.b16 %v484
    %v551 = vunpack.c.l.b16 %v485
    %v552 = vunpack.c.h.b16 %v485
    %v553 = vunpack.c.l.b16 %v486
    %v554 = vunpack.c.h.b16 %v486
    %v555 = vunpack.c.l.b16 %v487
    %v556 = vunpack.c.h.b16 %v487
    %v557 = vunpack.c.l.b16 %v488
    %v558 = vunpack.c.h.b16 %v488
    %v559 = vunpack.c.l.b16 %v489
    %v560 = vunpack.c.h.b16 %v489
    %v561 = vunpack.c.l.b16 %v490
    %v562 = vunpack.c.h.b16 %v490
    %v563 = vunpack.c.l.b16 %v491
    %v564 = vunpack.c.h.b16 %v491
    %v565 = vunpack.c.l.b16 %v492
    %v566 = vunpack.c.h.b16 %v492
    %v567 = vunpack.c.l.b16 %v493
    %v568 = vunpack.c.h.b16 %v493
    %v569 = vunpack.c.l.b16 %v494
    %v570 = vunpack.c.h.b16 %v494
    %v571 = vunpack.c.l.b16 %v495
    %v572 = vunpack.c.h.b16 %v495
    %v573 = vunpack.c.l.b16 %v496
    %v574 = vunpack.c.h.b16 %v496
    %v575 = vunpack.c.l.b16 %v497
    %v576 = vunpack.c.h.b16 %v497
    %v577 = vunpack.c.l.b16 %v498
    %v578 = vunpack.c.h.b16 %v498
    %v579 = vunpack.c.l.b16 %v499
    %v580 = vunpack.c.h.b16 %v499
    %v581 = vunpack.c.l.b16 %v500
    %v582 = vunpack.c.h.b16 %v500
    %v583 = vunpack.c.l.b16 %v501
    %v584 = vunpack.c.h.b16 %v501
    %v585 = vunpack.c.l.b16 %v502
    %v586 = vunpack.c.h.b16 %v502
    %v587 = vunpack.c.l.b16 %v503
    %v588 = vunpack.c.h.b16 %v503
    %v589 = vunpack.c.l.b16 %v504
    %v590 = vunpack.c.h.b16 %v504
    %v591 = vunpack.c.l.b16 %v505
    %v592 = vunpack.c.h.b16 %v505
    %v593 = vunpack.c.l.b16 %v506
    %v594 = vunpack.c.h.b16 %v506
    %v595 = vunpack.c.l.b16 %v507
    %v596 = vunpack.c.h.b16 %v507
    %v597 = vunpack.c.l.b16 %v508
    %v598 = vunpack.c.h.b16 %v508
    %v599 = vunpack.c.l.b16 %v509
    %v600 = vunpack.c.h.b16 %v509
    %v601 = vunpack.c.l.b16 %v510
    %v602 = vunpack.c.h.b16 %v510
    %v603 = vunpack.c.l.b16 %v511
    %v604 = vunpack.c.h.b16 %v511
    %v605 = vunpack.c.l.b16 %v512
    %v606 = vunpack.c.h.b16 %v512
    %v607 = vunpack.c.l.b16 %v513
    %v608 = vunpack.c.h.b16 %v513
    %v609 = vunpack.c.l.b16 %v514
    %v610 = vunpack.c.h.b16 %v514
    %v611 = vpack.c.b16 %v551, %v547
    %v612 = vpack.c.b16 %v552, %v548
    %v613 = vpack.c.b16 %v553, %v549
    %v614 = vpack.c.b16 %v554, %v550
    %v615 = vpack.c.b16 %v559, %v555
    %v616 = vpack.c.b16 %v560, %v556
    %v617 = vpack.c.b16 %v561, %v557
    %v618 = vpack.c.b16 %v562, %v558
    %v619 = vpack.c.b16 %v567, %v563
    %v620 = vpack.c.b16 %v568, %v564
    %v621 = vpack.c.b16 %v569, %v565
    %v622 = vpack.c.b16 %v570, %v566
    %v623 = vpack.c.b16 %v575, %v571
    %v624 = vpack.c.b16 %v576, %v572
    %v625 = vpack.c.b16 %v577, %v573
    %v626 = vpack.c.b16 %v578, %v574
    %v627 = vpack.c.b16 %v583, %v579
    %v628 = vpack.c.b16 %v584, %v580
    %v629 = vpack.c.b16 %v585, %v581
    %v630 = vpack.c.b16 %v586, %v582
    %v631 = vpack.c.b16 %v591, %v587
    %v632 = vpack.c.b16 %v592, %v588
    %v633 = vpack.c.b16 %v593, %v589
    %v634 = vpack.c.b16 %v594, %v590
    %v635 = vpack.c.b16 %v599, %v595
    %v636 = vpack.c.b16 %v600, %v596
    %v637 = vpack.c.b16 %v601, %v597
    %v638 = vpack.c.b16 %v602, %v598
    %v639 = vpack.c.b16 %v607, %v603
    %v640 = vpack.c.b16 %v608, %v604
    %v641 = vpack.c.b16 %v609, %v605
    %v642 = vpack.c.b16 %v610, %v606
    %675 = vmatprep.subr.bf16.mxu0 %v612
    %676 = vmatpush1.bf16.msra.mxu0 %v611
    %677 = vmatprep.subr.bf16.mxu0 %v616
    %678 = vmatpush1.bf16.msra.mxu0 %v615
    %679 = vmatprep.subr.bf16.mxu0 %v620
    %680 = vmatpush1.bf16.msra.mxu0 %v619
    %681 = vmatprep.subr.bf16.mxu0 %v624
    %682 = vmatpush1.bf16.msra.mxu0 %v623
    %683 = vmatprep.subr.bf16.mxu0 %v628
    %684 = vmatpush1.bf16.msra.mxu0 %v627
    %685 = vmatprep.subr.bf16.mxu0 %v632
    %686 = vmatpush1.bf16.msra.mxu0 %v631
    %687 = vmatprep.subr.bf16.mxu0 %v636
    %688 = vmatpush1.bf16.msra.mxu0 %v635
    %689 = vmatprep.subr.bf16.mxu0 %v640
    %690 = vmatpush1.bf16.msra.mxu0 %v639
    %691 = vmatprep.subr.bf16.mxu0 0
    %692 = vmatpush1.bf16.msra.mxu0 0
    %693 = vmatprep.subr.bf16.mxu0 0
    %694 = vmatpush1.bf16.msra.mxu0 0
    %695 = vmatprep.subr.bf16.mxu0 0
    %696 = vmatpush1.bf16.msra.mxu0 0
    %697 = vmatprep.subr.bf16.mxu0 0
    %698 = vmatpush1.bf16.msra.mxu0 0
    %699 = vmatprep.subr.bf16.mxu0 0
    %700 = vmatpush1.bf16.msra.mxu0 0
    %701 = vmatprep.subr.bf16.mxu0 0
    %702 = vmatpush1.bf16.msra.mxu0 0
    %703 = vmatprep.subr.bf16.mxu0 0
    %704 = vmatpush1.bf16.msra.mxu0 0
    %705 = vmatprep.subr.bf16.mxu0 0
    %706 = vmatpush1.bf16.msra.mxu0 0
    %707 = vmatprep.mubr.bf16.mxu0 0
    %708 = vmatmul.mubr.bf16.gmra.mrb[0].mxu0 %v482
    %v709 = vpop.f32.mrb[0].mxu0
    %v710 = vadd.f32 0.0, %v709
    %v711 = vpop.f32.mrb[0].mxu0
    %v712 = vadd.f32 0.0, %v711
    %v713 = vpop.f32.mrb[0].mxu0
    %v714 = vpop.f32.mrb[0].mxu0
    %715 = vdwg.mxu0
    %716 = vmatprep.subr.bf16.mxu0 %v614
    %717 = vmatpush1.bf16.msra.mxu0 %v613
    %718 = vmatprep.subr.bf16.mxu0 %v618
    %719 = vmatpush1.bf16.msra.mxu0 %v617
    %720 = vmatprep.subr.bf16.mxu0 %v622
    %721 = vmatpush1.bf16.msra.mxu0 %v621
    %722 = vmatprep.subr.bf16.mxu0 %v626
    %723 = vmatpush1.bf16.msra.mxu0 %v625
    %724 = vmatprep.subr.bf16.mxu0 %v630
    %725 = vmatpush1.bf16.msra.mxu0 %v629
    %726 = vmatprep.subr.bf16.mxu0 %v634
    %727 = vmatpush1.bf16.msra.mxu0 %v633
    %728 = vmatprep.subr.bf16.mxu0 %v638
    %729 = vmatpush1.bf16.msra.mxu0 %v637
    %730 = vmatprep.subr.bf16.mxu0 %v642
    %731 = vmatpush1.bf16.msra.mxu0 %v641
    %732 = vmatprep.subr.bf16.mxu0 0
    %733 = vmatpush1.bf16.msra.mxu0 0
    %734 = vmatprep.subr.bf16.mxu0 0
    %735 = vmatpush1.bf16.msra.mxu0 0
    %736 = vmatprep.subr.bf16.mxu0 0
    %737 = vmatpush1.bf16.msra.mxu0 0
    %738 = vmatprep.subr.bf16.mxu0 0
    %739 = vmatpush1.bf16.msra.mxu0 0
    %740 = vmatprep.subr.bf16.mxu0 0
    %741 = vmatpush1.bf16.msra.mxu0 0
    %742 = vmatprep.subr.bf16.mxu0 0
    %743 = vmatpush1.bf16.msra.mxu0 0
    %744 = vmatprep.subr.bf16.mxu0 0
    %745 = vmatpush1.bf16.msra.mxu0 0
    %746 = vmatprep.subr.bf16.mxu0 0
    %747 = vmatpush1.bf16.msra.mxu0 0
    %748 = vmatprep.mubr.bf16.mxu0 0
    %749 = vmatmul.mubr.bf16.gmra.mrb[0].mxu0 %v482
    %v750 = vpop.f32.mrb[0].mxu0
    %v751 = vadd.f32 0.0, %v750
    %v752 = vpop.f32.mrb[0].mxu0
    %v753 = vadd.f32 0.0, %v752
    %v754 = vpop.f32.mrb[0].mxu0
    %v755 = vpop.f32.mrb[0].mxu0
    %756 = vdwg.mxu0
    %v757 = vadd.f32 %v478, %v710
    %v758 = vadd.f32 %v479, %v712
    %v759 = vadd.f32 %v480, %v751
    %v760 = vadd.f32 %v481, %v753
    %v761 = vxor.u32 %v757, 2147483648
    %v762 = vmul.f32 %v761, 1.442695
    %v763 = vpow.pop %v762
    %v764 = vadd.f32 %v763, 1.0
    %v765 = vrcp.pop %v764
    %v766 = vmul.f32 1.0, %v765
    %v767 = vxor.u32 %v758, 2147483648
    %v768 = vmul.f32 %v767, 1.442695
    %v769 = vpow.pop %v768
    %v770 = vadd.f32 %v769, 1.0
    %v771 = vrcp.pop %v770
    %v772 = vmul.f32 1.0, %v771
    %v773 = vtanh.pop %v759
    %v774 = vxor.u32 %v760, 2147483648
    %v775 = vmul.f32 %v774, 1.442695
    %v776 = vpow.pop %v775
    %v777 = vadd.f32 %v776, 1.0
    %v778 = vrcp.pop %v777
    %v779 = vmul.f32 1.0, %v778
    %v780 = vmul.f32 %v772, %v473
    %v781 = vmul.f32 %v766, %v773
    %v782 = vadd.f32 %v780, %v781
    %v783 = vtanh.pop %v782
    %v784 = vmul.f32 %v779, %v783
    %v785 = vld [vmem:[%s1] sm:$0xff]
    %787 = vset.pattern.permute.xlu0 0
    %788 = vperm.xlu0 %787, %v785
    %v789 = vpop.permute.xlu0 %788
    %v791 = vmul.f32 %v789, %v784
    %v792 = vadd.f32 %v474, %v791
    %s793 = smul.u32 1, 4
    %s794 = smul.addr %s793, 8
    %s795 = scalar_lea.vmem [#allocation2], %s794
    %v796 = vld [vmem:[%s795] sm:$0xff]
    %v797 = vld [vmem:[%s795 + $0x8] sm:$0xff]
    %v798 = vld [vmem:[%s795 + $0x10] sm:$0xff]
    %v799 = vld [vmem:[%s795 + $0x18] sm:$0xff]
    %v800 = vpack.c.bf16 %v784, %v784
    %801 = vmatprep.subr.bf16.mxu0 %v612
    %802 = vmatpush1.bf16.msra.mxu0 %v611
    %803 = vmatprep.subr.bf16.mxu0 %v616
    %804 = vmatpush1.bf16.msra.mxu0 %v615
    %805 = vmatprep.subr.bf16.mxu0 %v620
    %806 = vmatpush1.bf16.msra.mxu0 %v619
    %807 = vmatprep.subr.bf16.mxu0 %v624
    %808 = vmatpush1.bf16.msra.mxu0 %v623
    %809 = vmatprep.subr.bf16.mxu0 %v628
    %810 = vmatpush1.bf16.msra.mxu0 %v627
    %811 = vmatprep.subr.bf16.mxu0 %v632
    %812 = vmatpush1.bf16.msra.mxu0 %v631
    %813 = vmatprep.subr.bf16.mxu0 %v636
    %814 = vmatpush1.bf16.msra.mxu0 %v635
    %815 = vmatprep.subr.bf16.mxu0 %v640
    %816 = vmatpush1.bf16.msra.mxu0 %v639
    %817 = vmatprep.subr.bf16.mxu0 0
    %818 = vmatpush1.bf16.msra.mxu0 0
    %819 = vmatprep.subr.bf16.mxu0 0
    %820 = vmatpush1.bf16.msra.mxu0 0
    %821 = vmatprep.subr.bf16.mxu0 0
    %822 = vmatpush1.bf16.msra.mxu0 0
    %823 = vmatprep.subr.bf16.mxu0 0
    %824 = vmatpush1.bf16.msra.mxu0 0
    %825 = vmatprep.subr.bf16.mxu0 0
    %826 = vmatpush1.bf16.msra.mxu0 0
    %827 = vmatprep.subr.bf16.mxu0 0
    %828 = vmatpush1.bf16.msra.mxu0 0
    %829 = vmatprep.subr.bf16.mxu0 0
    %830 = vmatpush1.bf16.msra.mxu0 0
    %831 = vmatprep.subr.bf16.mxu0 0
    %832 = vmatpush1.bf16.msra.mxu0 0
    %833 = vmatprep.mubr.bf16.mxu0 0
    %834 = vmatmul.mubr.bf16.gmra.mrb[0].mxu0 %v800
    %v835 = vpop.f32.mrb[0].mxu0
    %v836 = vadd.f32 0.0, %v835
    %v837 = vpop.f32.mrb[0].mxu0
    %v838 = vadd.f32 0.0, %v837
    %v839 = vpop.f32.mrb[0].mxu0
    %v840 = vpop.f32.mrb[0].mxu0
    %841 = vdwg.mxu0
    %842 = vmatprep.subr.bf16.mxu0 %v614
    %843 = vmatpush1.bf16.msra.mxu0 %v613
    %844 = vmatprep.subr.bf16.mxu0 %v618
    %845 = vmatpush1.bf16.msra.mxu0 %v617
    %846 = vmatprep.subr.bf16.mxu0 %v622
    %847 = vmatpush1.bf16.msra.mxu0 %v621
    %848 = vmatprep.subr.bf16.mxu0 %v626
    %849 = vmatpush1.bf16.msra.mxu0 %v625
    %850 = vmatprep.subr.bf16.mxu0 %v630
    %851 = vmatpush1.bf16.msra.mxu0 %v629
    %852 = vmatprep.subr.bf16.mxu0 %v634
    %853 = vmatpush1.bf16.msra.mxu0 %v633
    %854 = vmatprep.subr.bf16.mxu0 %v638
    %855 = vmatpush1.bf16.msra.mxu0 %v637
    %856 = vmatprep.subr.bf16.mxu0 %v642
    %857 = vmatpush1.bf16.msra.mxu0 %v641
    %858 = vmatprep.subr.bf16.mxu0 0
    %859 = vmatpush1.bf16.msra.mxu0 0
    %860 = vmatprep.subr.bf16.mxu0 0
    %861 = vmatpush1.bf16.msra.mxu0 0
    %862 = vmatprep.subr.bf16.mxu0 0
    %863 = vmatpush1.bf16.msra.mxu0 0
    %864 = vmatprep.subr.bf16.mxu0 0
    %865 = vmatpush1.bf16.msra.mxu0 0
    %866 = vmatprep.subr.bf16.mxu0 0
    %867 = vmatpush1.bf16.msra.mxu0 0
    %868 = vmatprep.subr.bf16.mxu0 0
    %869 = vmatpush1.bf16.msra.mxu0 0
    %870 = vmatprep.subr.bf16.mxu0 0
    %871 = vmatpush1.bf16.msra.mxu0 0
    %872 = vmatprep.subr.bf16.mxu0 0
    %873 = vmatpush1.bf16.msra.mxu0 0
    %874 = vmatprep.mubr.bf16.mxu0 0
    %875 = vmatmul.mubr.bf16.gmra.mrb[0].mxu0 %v800
    %v876 = vpop.f32.mrb[0].mxu0
    %v877 = vadd.f32 0.0, %v876
    %v878 = vpop.f32.mrb[0].mxu0
    %v879 = vadd.f32 0.0, %v878
    %v880 = vpop.f32.mrb[0].mxu0
    %v881 = vpop.f32.mrb[0].mxu0
    %882 = vdwg.mxu0
    %v883 = vadd.f32 %v796, %v836
    %v884 = vadd.f32 %v797, %v838
    %v885 = vadd.f32 %v798, %v877
    %v886 = vadd.f32 %v799, %v879
    %v887 = vxor.u32 %v883, 2147483648
    %v888 = vmul.f32 %v887, 1.442695
    %v889 = vpow.pop %v888
    %v890 = vadd.f32 %v889, 1.0
    %v891 = vrcp.pop %v890
    %v892 = vmul.f32 1.0, %v891
    %v893 = vxor.u32 %v884, 2147483648
    %v894 = vmul.f32 %v893, 1.442695
    %v895 = vpow.pop %v894
    %v896 = vadd.f32 %v895, 1.0
    %v897 = vrcp.pop %v896
    %v898 = vmul.f32 1.0, %v897
    %v899 = vtanh.pop %v885
    %v900 = vxor.u32 %v886, 2147483648
    %v901 = vmul.f32 %v900, 1.442695
    %v902 = vpow.pop %v901
    %v903 = vadd.f32 %v902, 1.0
    %v904 = vrcp.pop %v903
    %v905 = vmul.f32 1.0, %v904
    %v906 = vmul.f32 %v898, %v782
    %v907 = vmul.f32 %v892, %v899
    %v908 = vadd.f32 %v906, %v907
    %v909 = vtanh.pop %v908
    %v910 = vmul.f32 %v905, %v909
    %s911 = scalar_lea.vmem %s1, 8
    %v912 = vld [vmem:[%s911] sm:$0xff]
    %914 = vset.pattern.permute.xlu0 0
    %915 = vperm.xlu0 %914, %v912
    %v916 = vpop.permute.xlu0 %915
    %v918 = vmul.f32 %v916, %v910
    %v919 = vadd.f32 %v792, %v918
    %s920 = smul.u32 2, 4
    %s921 = smul.addr %s920, 8
    %s922 = scalar_lea.vmem [#allocation2], %s921
    %v923 = vld [vmem:[%s922] sm:$0xff]
    %v924 = vld [vmem:[%s922 + $0x8] sm:$0xff]
    %v925 = vld [vmem:[%s922 + $0x10] sm:$0xff]
    %v926 = vld [vmem:[%s922 + $0x18] sm:$0xff]
    %v927 = vpack.c.bf16 %v910, %v910
    %928 = vmatprep.subr.bf16.mxu0 %v612
    %929 = vmatpush1.bf16.msra.mxu0 %v611
    %930 = vmatprep.subr.bf16.mxu0 %v616
    %931 = vmatpush1.bf16.msra.mxu0 %v615
    %932 = vmatprep.subr.bf16.mxu0 %v620
    %933 = vmatpush1.bf16.msra.mxu0 %v619
    %934 = vmatprep.subr.bf16.mxu0 %v624
    %935 = vmatpush1.bf16.msra.mxu0 %v623
    %936 = vmatprep.subr.bf16.mxu0 %v628
    %937 = vmatpush1.bf16.msra.mxu0 %v627
    %938 = vmatprep.subr.bf16.mxu0 %v632
    %939 = vmatpush1.bf16.msra.mxu0 %v631
    %940 = vmatprep.subr.bf16.mxu0 %v636
    %941 = vmatpush1.bf16.msra.mxu0 %v635
    %942 = vmatprep.subr.bf16.mxu0 %v640
    %943 = vmatpush1.bf16.msra.mxu0 %v639
    %944 = vmatprep.subr.bf16.mxu0 0
    %945 = vmatpush1.bf16.msra.mxu0 0
    %946 = vmatprep.subr.bf16.mxu0 0
    %947 = vmatpush1.bf16.msra.mxu0 0
    %948 = vmatprep.subr.bf16.mxu0 0
    %949 = vmatpush1.bf16.msra.mxu0 0
    %950 = vmatprep.subr.bf16.mxu0 0
    %951 = vmatpush1.bf16.msra.mxu0 0
    %952 = vmatprep.subr.bf16.mxu0 0
    %953 = vmatpush1.bf16.msra.mxu0 0
    %954 = vmatprep.subr.bf16.mxu0 0
    %955 = vmatpush1.bf16.msra.mxu0 0
    %956 = vmatprep.subr.bf16.mxu0 0
    %957 = vmatpush1.bf16.msra.mxu0 0
    %958 = vmatprep.subr.bf16.mxu0 0
    %959 = vmatpush1.bf16.msra.mxu0 0
    %960 = vmatprep.mubr.bf16.mxu0 0
    %961 = vmatmul.mubr.bf16.gmra.mrb[0].mxu0 %v927
    %v962 = vpop.f32.mrb[0].mxu0
    %v963 = vadd.f32 0.0, %v962
    %v964 = vpop.f32.mrb[0].mxu0
    %v965 = vadd.f32 0.0, %v964
    %v966 = vpop.f32.mrb[0].mxu0
    %v967 = vpop.f32.mrb[0].mxu0
    %968 = vdwg.mxu0
    %969 = vmatprep.subr.bf16.mxu0 %v614
    %970 = vmatpush1.bf16.msra.mxu0 %v613
    %971 = vmatprep.subr.bf16.mxu0 %v618
    %972 = vmatpush1.bf16.msra.mxu0 %v617
    %973 = vmatprep.subr.bf16.mxu0 %v622
    %974 = vmatpush1.bf16.msra.mxu0 %v621
    %975 = vmatprep.subr.bf16.mxu0 %v626
    %976 = vmatpush1.bf16.msra.mxu0 %v625
    %977 = vmatprep.subr.bf16.mxu0 %v630
    %978 = vmatpush1.bf16.msra.mxu0 %v629
    %979 = vmatprep.subr.bf16.mxu0 %v634
    %980 = vmatpush1.bf16.msra.mxu0 %v633
    %981 = vmatprep.subr.bf16.mxu0 %v638
    %982 = vmatpush1.bf16.msra.mxu0 %v637
    %983 = vmatprep.subr.bf16.mxu0 %v642
    %984 = vmatpush1.bf16.msra.mxu0 %v641
    %985 = vmatprep.subr.bf16.mxu0 0
    %986 = vmatpush1.bf16.msra.mxu0 0
    %987 = vmatprep.subr.bf16.mxu0 0
    %988 = vmatpush1.bf16.msra.mxu0 0
    %989 = vmatprep.subr.bf16.mxu0 0
    %990 = vmatpush1.bf16.msra.mxu0 0
    %991 = vmatprep.subr.bf16.mxu0 0
    %992 = vmatpush1.bf16.msra.mxu0 0
    %993 = vmatprep.subr.bf16.mxu0 0
    %994 = vmatpush1.bf16.msra.mxu0 0
    %995 = vmatprep.subr.bf16.mxu0 0
    %996 = vmatpush1.bf16.msra.mxu0 0
    %997 = vmatprep.subr.bf16.mxu0 0
    %998 = vmatpush1.bf16.msra.mxu0 0
    %999 = vmatprep.subr.bf16.mxu0 0
    %1000 = vmatpush1.bf16.msra.mxu0 0
    %1001 = vmatprep.mubr.bf16.mxu0 0
    %1002 = vmatmul.mubr.bf16.gmra.mrb[0].mxu0 %v927
    %v1003 = vpop.f32.mrb[0].mxu0
    %v1004 = vadd.f32 0.0, %v1003
    %v1005 = vpop.f32.mrb[0].mxu0
    %v1006 = vadd.f32 0.0, %v1005
    %v1007 = vpop.f32.mrb[0].mxu0
    %v1008 = vpop.f32.mrb[0].mxu0
    %1009 = vdwg.mxu0
    %v1010 = vadd.f32 %v923, %v963
    %v1011 = vadd.f32 %v924, %v965
    %v1012 = vadd.f32 %v925, %v1004
    %v1013 = vadd.f32 %v926, %v1006
    %v1014 = vxor.u32 %v1010, 2147483648
    %v1015 = vmul.f32 %v1014, 1.442695
    %v1016 = vpow.pop %v1015
    %v1017 = vadd.f32 %v1016, 1.0
    %v1018 = vrcp.pop %v1017
    %v1019 = vmul.f32 1.0, %v1018
    %v1020 = vxor.u32 %v1011, 2147483648
    %v1021 = vmul.f32 %v1020, 1.442695
    %v1022 = vpow.pop %v1021
    %v1023 = vadd.f32 %v1022, 1.0
    %v1024 = vrcp.pop %v1023
    %v1025 = vmul.f32 1.0, %v1024
    %v1026 = vtanh.pop %v1012
    %v1027 = vxor.u32 %v1013, 2147483648
    %v1028 = vmul.f32 %v1027, 1.442695
    %v1029 = vpow.pop %v1028
    %v1030 = vadd.f32 %v1029, 1.0
    %v1031 = vrcp.pop %v1030
    %v1032 = vmul.f32 1.0, %v1031
    %v1033 = vmul.f32 %v1025, %v908
    %v1034 = vmul.f32 %v1019, %v1026
    %v1035 = vadd.f32 %v1033, %v1034
    %v1036 = vtanh.pop %v1035
    %v1037 = vmul.f32 %v1032, %v1036
    %s1038 = scalar_lea.vmem %s1, 16
    %v1039 = vld [vmem:[%s1038] sm:$0xff]
    %1041 = vset.pattern.permute.xlu0 0
    %1042 = vperm.xlu0 %1041, %v1039
    %v1043 = vpop.permute.xlu0 %1042
    %v1045 = vmul.f32 %v1043, %v1037
    %v1046 = vadd.f32 %v919, %v1045
    %s1047 = smul.u32 3, 4
    %s1048 = smul.addr %s1047, 8
    %s1049 = scalar_lea.vmem [#allocation2], %s1048
    %v1050 = vld [vmem:[%s1049] sm:$0xff]
    %v1051 = vld [vmem:[%s1049 + $0x8] sm:$0xff]
    %v1052 = vld [vmem:[%s1049 + $0x10] sm:$0xff]
    %v1053 = vld [vmem:[%s1049 + $0x18] sm:$0xff]
    %v1054 = vpack.c.bf16 %v1037, %v1037
    %1055 = vmatprep.subr.bf16.mxu0 %v612
    %1056 = vmatpush1.bf16.msra.mxu0 %v611
    %1057 = vmatprep.subr.bf16.mxu0 %v616
    %1058 = vmatpush1.bf16.msra.mxu0 %v615
    %1059 = vmatprep.subr.bf16.mxu0 %v620
    %1060 = vmatpush1.bf16.msra.mxu0 %v619
    %1061 = vmatprep.subr.bf16.mxu0 %v624
    %1062 = vmatpush1.bf16.msra.mxu0 %v623
    %1063 = vmatprep.subr.bf16.mxu0 %v628
    %1064 = vmatpush1.bf16.msra.mxu0 %v627
    %1065 = vmatprep.subr.bf16.mxu0 %v632
    %1066 = vmatpush1.bf16.msra.mxu0 %v631
    %1067 = vmatprep.subr.bf16.mxu0 %v636
    %1068 = vmatpush1.bf16.msra.mxu0 %v635
    %1069 = vmatprep.subr.bf16.mxu0 %v640
    %1070 = vmatpush1.bf16.msra.mxu0 %v639
    %1071 = vmatprep.subr.bf16.mxu0 0
    %1072 = vmatpush1.bf16.msra.mxu0 0
    %1073 = vmatprep.subr.bf16.mxu0 0
    %1074 = vmatpush1.bf16.msra.mxu0 0
    %1075 = vmatprep.subr.bf16.mxu0 0
    %1076 = vmatpush1.bf16.msra.mxu0 0
    %1077 = vmatprep.subr.bf16.mxu0 0
    %1078 = vmatpush1.bf16.msra.mxu0 0
    %1079 = vmatprep.subr.bf16.mxu0 0
    %1080 = vmatpush1.bf16.msra.mxu0 0
    %1081 = vmatprep.subr.bf16.mxu0 0
    %1082 = vmatpush1.bf16.msra.mxu0 0
    %1083 = vmatprep.subr.bf16.mxu0 0
    %1084 = vmatpush1.bf16.msra.mxu0 0
    %1085 = vmatprep.subr.bf16.mxu0 0
    %1086 = vmatpush1.bf16.msra.mxu0 0
    %1087 = vmatprep.mubr.bf16.mxu0 0
    %1088 = vmatmul.mubr.bf16.gmra.mrb[0].mxu0 %v1054
    %v1089 = vpop.f32.mrb[0].mxu0
    %v1090 = vadd.f32 0.0, %v1089
    %v1091 = vpop.f32.mrb[0].mxu0
    %v1092 = vadd.f32 0.0, %v1091
    %v1093 = vpop.f32.mrb[0].mxu0
    %v1094 = vpop.f32.mrb[0].mxu0
    %1095 = vdwg.mxu0
    %1096 = vmatprep.subr.bf16.mxu0 %v614
    %1097 = vmatpush1.bf16.msra.mxu0 %v613
    %1098 = vmatprep.subr.bf16.mxu0 %v618
    %1099 = vmatpush1.bf16.msra.mxu0 %v617
    %1100 = vmatprep.subr.bf16.mxu0 %v622
    %1101 = vmatpush1.bf16.msra.mxu0 %v621
    %1102 = vmatprep.subr.bf16.mxu0 %v626
    %1103 = vmatpush1.bf16.msra.mxu0 %v625
    %1104 = vmatprep.subr.bf16.mxu0 %v630
    %1105 = vmatpush1.bf16.msra.mxu0 %v629
    %1106 = vmatprep.subr.bf16.mxu0 %v634
    %1107 = vmatpush1.bf16.msra.mxu0 %v633
    %1108 = vmatprep.subr.bf16.mxu0 %v638
    %1109 = vmatpush1.bf16.msra.mxu0 %v637
    %1110 = vmatprep.subr.bf16.mxu0 %v642
    %1111 = vmatpush1.bf16.msra.mxu0 %v641
    %1112 = vmatprep.subr.bf16.mxu0 0
    %1113 = vmatpush1.bf16.msra.mxu0 0
    %1114 = vmatprep.subr.bf16.mxu0 0
    %1115 = vmatpush1.bf16.msra.mxu0 0
    %1116 = vmatprep.subr.bf16.mxu0 0
    %1117 = vmatpush1.bf16.msra.mxu0 0
    %1118 = vmatprep.subr.bf16.mxu0 0
    %1119 = vmatpush1.bf16.msra.mxu0 0
    %1120 = vmatprep.subr.bf16.mxu0 0
    %1121 = vmatpush1.bf16.msra.mxu0 0
    %1122 = vmatprep.subr.bf16.mxu0 0
    %1123 = vmatpush1.bf16.msra.mxu0 0
    %1124 = vmatprep.subr.bf16.mxu0 0
    %1125 = vmatpush1.bf16.msra.mxu0 0
    %1126 = vmatprep.subr.bf16.mxu0 0
    %1127 = vmatpush1.bf16.msra.mxu0 0
    %1128 = vmatprep.mubr.bf16.mxu0 0
    %1129 = vmatmul.mubr.bf16.gmra.mrb[0].mxu0 %v1054
    %v1130 = vpop.f32.mrb[0].mxu0
    %v1131 = vadd.f32 0.0, %v1130
    %v1132 = vpop.f32.mrb[0].mxu0
    %v1133 = vadd.f32 0.0, %v1132
    %v1134 = vpop.f32.mrb[0].mxu0
    %v1135 = vpop.f32.mrb[0].mxu0
    %1136 = vdwg.mxu0
    %v1137 = vadd.f32 %v1050, %v1090
    %v1138 = vadd.f32 %v1051, %v1092
    %v1139 = vadd.f32 %v1052, %v1131
    %v1140 = vadd.f32 %v1053, %v1133
    %v1141 = vxor.u32 %v1137, 2147483648
    %v1142 = vmul.f32 %v1141, 1.442695
    %v1143 = vpow.pop %v1142
    %v1144 = vadd.f32 %v1143, 1.0
    %v1145 = vrcp.pop %v1144
    %v1146 = vmul.f32 1.0, %v1145
    %v1147 = vxor.u32 %v1138, 2147483648
    %v1148 = vmul.f32 %v1147, 1.442695
    %v1149 = vpow.pop %v1148
    %v1150 = vadd.f32 %v1149, 1.0
    %v1151 = vrcp.pop %v1150
    %v1152 = vmul.f32 1.0, %v1151
    %v1153 = vtanh.pop %v1139
    %v1154 = vxor.u32 %v1140, 2147483648
    %v1155 = vmul.f32 %v1154, 1.442695
    %v1156 = vpow.pop %v1155
    %v1157 = vadd.f32 %v1156, 1.0
    %v1158 = vrcp.pop %v1157
    %v1159 = vmul.f32 1.0, %v1158
    %v1160 = vmul.f32 %v1152, %v1035
    %v1161 = vmul.f32 %v1146, %v1153
    %v1162 = vadd.f32 %v1160, %v1161
    %v1163 = vtanh.pop %v1162
    %v1164 = vmul.f32 %v1159, %v1163
    %s1165 = scalar_lea.vmem %s1, 24
    %v1166 = vld [vmem:[%s1165] sm:$0xff]
    %1168 = vset.pattern.permute.xlu0 0
    %1169 = vperm.xlu0 %1168, %v1166
    %v1170 = vpop.permute.xlu0 %1169
    %v1172 = vmul.f32 %v1170, %v1164
    %v1173 = vadd.f32 %v1046, %v1172
    %s1174 = smul.u32 4, 4
    %s1175 = smul.addr %s1174, 8
    %s1176 = scalar_lea.vmem [#allocation2], %s1175
    %v1177 = vld [vmem:[%s1176] sm:$0xff]
    %v1178 = vld [vmem:[%s1176 + $0x8] sm:$0xff]
    %v1179 = vld [vmem:[%s1176 + $0x10] sm:$0xff]
    %v1180 = vld [vmem:[%s1176 + $0x18] sm:$0xff]
    %v1181 = vpack.c.bf16 %v1164, %v1164
    %1182 = vmatprep.subr.bf16.mxu0 %v612
    %1183 = vmatpush1.bf16.msra.mxu0 %v611
    %1184 = vmatprep.subr.bf16.mxu0 %v616
    %1185 = vmatpush1.bf16.msra.mxu0 %v615
    %1186 = vmatprep.subr.bf16.mxu0 %v620
    %1187 = vmatpush1.bf16.msra.mxu0 %v619
    %1188 = vmatprep.subr.bf16.mxu0 %v624
    %1189 = vmatpush1.bf16.msra.mxu0 %v623
    %1190 = vmatprep.subr.bf16.mxu0 %v628
    %1191 = vmatpush1.bf16.msra.mxu0 %v627
    %1192 = vmatprep.subr.bf16.mxu0 %v632
    %1193 = vmatpush1.bf16.msra.mxu0 %v631
    %1194 = vmatprep.subr.bf16.mxu0 %v636
    %1195 = vmatpush1.bf16.msra.mxu0 %v635
    %1196 = vmatprep.subr.bf16.mxu0 %v640
    %1197 = vmatpush1.bf16.msra.mxu0 %v639
    %1198 = vmatprep.subr.bf16.mxu0 0
    %1199 = vmatpush1.bf16.msra.mxu0 0
    %1200 = vmatprep.subr.bf16.mxu0 0
    %1201 = vmatpush1.bf16.msra.mxu0 0
    %1202 = vmatprep.subr.bf16.mxu0 0
    %1203 = vmatpush1.bf16.msra.mxu0 0
    %1204 = vmatprep.subr.bf16.mxu0 0
    %1205 = vmatpush1.bf16.msra.mxu0 0
    %1206 = vmatprep.subr.bf16.mxu0 0
    %1207 = vmatpush1.bf16.msra.mxu0 0
    %1208 = vmatprep.subr.bf16.mxu0 0
    %1209 = vmatpush1.bf16.msra.mxu0 0
    %1210 = vmatprep.subr.bf16.mxu0 0
    %1211 = vmatpush1.bf16.msra.mxu0 0
    %1212 = vmatprep.subr.bf16.mxu0 0
    %1213 = vmatpush1.bf16.msra.mxu0 0
    %1214 = vmatprep.mubr.bf16.mxu0 0
    %1215 = vmatmul.mubr.bf16.gmra.mrb[0].mxu0 %v1181
    %v1216 = vpop.f32.mrb[0].mxu0
    %v1217 = vadd.f32 0.0, %v1216
    %v1218 = vpop.f32.mrb[0].mxu0
    %v1219 = vadd.f32 0.0, %v1218
    %v1220 = vpop.f32.mrb[0].mxu0
    %v1221 = vpop.f32.mrb[0].mxu0
    %1222 = vdwg.mxu0
    %1223 = vmatprep.subr.bf16.mxu0 %v614
    %1224 = vmatpush1.bf16.msra.mxu0 %v613
    %1225 = vmatprep.subr.bf16.mxu0 %v618
    %1226 = vmatpush1.bf16.msra.mxu0 %v617
    %1227 = vmatprep.subr.bf16.mxu0 %v622
    %1228 = vmatpush1.bf16.msra.mxu0 %v621
    %1229 = vmatprep.subr.bf16.mxu0 %v626
    %1230 = vmatpush1.bf16.msra.mxu0 %v625
    %1231 = vmatprep.subr.bf16.mxu0 %v630
    %1232 = vmatpush1.bf16.msra.mxu0 %v629
    %1233 = vmatprep.subr.bf16.mxu0 %v634
    %1234 = vmatpush1.bf16.msra.mxu0 %v633
    %1235 = vmatprep.subr.bf16.mxu0 %v638
    %1236 = vmatpush1.bf16.msra.mxu0 %v637
    %1237 = vmatprep.subr.bf16.mxu0 %v642
    %1238 = vmatpush1.bf16.msra.mxu0 %v641
    %1239 = vmatprep.subr.bf16.mxu0 0
    %1240 = vmatpush1.bf16.msra.mxu0 0
    %1241 = vmatprep.subr.bf16.mxu0 0
    %1242 = vmatpush1.bf16.msra.mxu0 0
    %1243 = vmatprep.subr.bf16.mxu0 0
    %1244 = vmatpush1.bf16.msra.mxu0 0
    %1245 = vmatprep.subr.bf16.mxu0 0
    %1246 = vmatpush1.bf16.msra.mxu0 0
    %1247 = vmatprep.subr.bf16.mxu0 0
    %1248 = vmatpush1.bf16.msra.mxu0 0
    %1249 = vmatprep.subr.bf16.mxu0 0
    %1250 = vmatpush1.bf16.msra.mxu0 0
    %1251 = vmatprep.subr.bf16.mxu0 0
    %1252 = vmatpush1.bf16.msra.mxu0 0
    %1253 = vmatprep.subr.bf16.mxu0 0
    %1254 = vmatpush1.bf16.msra.mxu0 0
    %1255 = vmatprep.mubr.bf16.mxu0 0
    %1256 = vmatmul.mubr.bf16.gmra.mrb[0].mxu0 %v1181
    %v1257 = vpop.f32.mrb[0].mxu0
    %v1258 = vadd.f32 0.0, %v1257
    %v1259 = vpop.f32.mrb[0].mxu0
    %v1260 = vadd.f32 0.0, %v1259
    %v1261 = vpop.f32.mrb[0].mxu0
    %v1262 = vpop.f32.mrb[0].mxu0
    %1263 = vdwg.mxu0
    %v1264 = vadd.f32 %v1177, %v1217
    %v1265 = vadd.f32 %v1178, %v1219
    %v1266 = vadd.f32 %v1179, %v1258
    %v1267 = vadd.f32 %v1180, %v1260
    %v1268 = vxor.u32 %v1264, 2147483648
    %v1269 = vmul.f32 %v1268, 1.442695
    %v1270 = vpow.pop %v1269
    %v1271 = vadd.f32 %v1270, 1.0
    %v1272 = vrcp.pop %v1271
    %v1273 = vmul.f32 1.0, %v1272
    %v1274 = vxor.u32 %v1265, 2147483648
    %v1275 = vmul.f32 %v1274, 1.442695
    %v1276 = vpow.pop %v1275
    %v1277 = vadd.f32 %v1276, 1.0
    %v1278 = vrcp.pop %v1277
    %v1279 = vmul.f32 1.0, %v1278
    %v1280 = vtanh.pop %v1266
    %v1281 = vxor.u32 %v1267, 2147483648
    %v1282 = vmul.f32 %v1281, 1.442695
    %v1283 = vpow.pop %v1282
    %v1284 = vadd.f32 %v1283, 1.0
    %v1285 = vrcp.pop %v1284
    %v1286 = vmul.f32 1.0, %v1285
    %v1287 = vmul.f32 %v1279, %v1162
    %v1288 = vmul.f32 %v1273, %v1280
    %v1289 = vadd.f32 %v1287, %v1288
    %v1290 = vtanh.pop %v1289
    %v1291 = vmul.f32 %v1286, %v1290
    %s1292 = scalar_lea.vmem %s1, 32
    %v1293 = vld [vmem:[%s1292] sm:$0xff]
    %1295 = vset.pattern.permute.xlu0 0
    %1296 = vperm.xlu0 %1295, %v1293
    %v1297 = vpop.permute.xlu0 %1296
    %v1299 = vmul.f32 %v1297, %v1291
    %v1300 = vadd.f32 %v1173, %v1299
    %s1301 = smul.u32 5, 4
    %s1302 = smul.addr %s1301, 8
    %s1303 = scalar_lea.vmem [#allocation2], %s1302
    %v1304 = vld [vmem:[%s1303] sm:$0xff]
    %v1305 = vld [vmem:[%s1303 + $0x8] sm:$0xff]
    %v1306 = vld [vmem:[%s1303 + $0x10] sm:$0xff]
    %v1307 = vld [vmem:[%s1303 + $0x18] sm:$0xff]
    %v1308 = vpack.c.bf16 %v1291, %v1291
    %1309 = vmatprep.subr.bf16.mxu0 %v612
    %1310 = vmatpush1.bf16.msra.mxu0 %v611
    %1311 = vmatprep.subr.bf16.mxu0 %v616
    %1312 = vmatpush1.bf16.msra.mxu0 %v615
    %1313 = vmatprep.subr.bf16.mxu0 %v620
    %1314 = vmatpush1.bf16.msra.mxu0 %v619
    %1315 = vmatprep.subr.bf16.mxu0 %v624
    %1316 = vmatpush1.bf16.msra.mxu0 %v623
    %1317 = vmatprep.subr.bf16.mxu0 %v628
    %1318 = vmatpush1.bf16.msra.mxu0 %v627
    %1319 = vmatprep.subr.bf16.mxu0 %v632
    %1320 = vmatpush1.bf16.msra.mxu0 %v631
    %1321 = vmatprep.subr.bf16.mxu0 %v636
    %1322 = vmatpush1.bf16.msra.mxu0 %v635
    %1323 = vmatprep.subr.bf16.mxu0 %v640
    %1324 = vmatpush1.bf16.msra.mxu0 %v639
    %1325 = vmatprep.subr.bf16.mxu0 0
    %1326 = vmatpush1.bf16.msra.mxu0 0
    %1327 = vmatprep.subr.bf16.mxu0 0
    %1328 = vmatpush1.bf16.msra.mxu0 0
    %1329 = vmatprep.subr.bf16.mxu0 0
    %1330 = vmatpush1.bf16.msra.mxu0 0
    %1331 = vmatprep.subr.bf16.mxu0 0
    %1332 = vmatpush1.bf16.msra.mxu0 0
    %1333 = vmatprep.subr.bf16.mxu0 0
    %1334 = vmatpush1.bf16.msra.mxu0 0
    %1335 = vmatprep.subr.bf16.mxu0 0
    %1336 = vmatpush1.bf16.msra.mxu0 0
    %1337 = vmatprep.subr.bf16.mxu0 0
    %1338 = vmatpush1.bf16.msra.mxu0 0
    %1339 = vmatprep.subr.bf16.mxu0 0
    %1340 = vmatpush1.bf16.msra.mxu0 0
    %1341 = vmatprep.mubr.bf16.mxu0 0
    %1342 = vmatmul.mubr.bf16.gmra.mrb[0].mxu0 %v1308
    %v1343 = vpop.f32.mrb[0].mxu0
    %v1344 = vadd.f32 0.0, %v1343
    %v1345 = vpop.f32.mrb[0].mxu0
    %v1346 = vadd.f32 0.0, %v1345
    %v1347 = vpop.f32.mrb[0].mxu0
    %v1348 = vpop.f32.mrb[0].mxu0
    %1349 = vdwg.mxu0
    %1350 = vmatprep.subr.bf16.mxu0 %v614
    %1351 = vmatpush1.bf16.msra.mxu0 %v613
    %1352 = vmatprep.subr.bf16.mxu0 %v618
    %1353 = vmatpush1.bf16.msra.mxu0 %v617
    %1354 = vmatprep.subr.bf16.mxu0 %v622
    %1355 = vmatpush1.bf16.msra.mxu0 %v621
    %1356 = vmatprep.subr.bf16.mxu0 %v626
    %1357 = vmatpush1.bf16.msra.mxu0 %v625
    %1358 = vmatprep.subr.bf16.mxu0 %v630
    %1359 = vmatpush1.bf16.msra.mxu0 %v629
    %1360 = vmatprep.subr.bf16.mxu0 %v634
    %1361 = vmatpush1.bf16.msra.mxu0 %v633
    %1362 = vmatprep.subr.bf16.mxu0 %v638
    %1363 = vmatpush1.bf16.msra.mxu0 %v637
    %1364 = vmatprep.subr.bf16.mxu0 %v642
    %1365 = vmatpush1.bf16.msra.mxu0 %v641
    %1366 = vmatprep.subr.bf16.mxu0 0
    %1367 = vmatpush1.bf16.msra.mxu0 0
    %1368 = vmatprep.subr.bf16.mxu0 0
    %1369 = vmatpush1.bf16.msra.mxu0 0
    %1370 = vmatprep.subr.bf16.mxu0 0
    %1371 = vmatpush1.bf16.msra.mxu0 0
    %1372 = vmatprep.subr.bf16.mxu0 0
    %1373 = vmatpush1.bf16.msra.mxu0 0
    %1374 = vmatprep.subr.bf16.mxu0 0
    %1375 = vmatpush1.bf16.msra.mxu0 0
    %1376 = vmatprep.subr.bf16.mxu0 0
    %1377 = vmatpush1.bf16.msra.mxu0 0
    %1378 = vmatprep.subr.bf16.mxu0 0
    %1379 = vmatpush1.bf16.msra.mxu0 0
    %1380 = vmatprep.subr.bf16.mxu0 0
    %1381 = vmatpush1.bf16.msra.mxu0 0
    %1382 = vmatprep.mubr.bf16.mxu0 0
    %1383 = vmatmul.mubr.bf16.gmra.mrb[0].mxu0 %v1308
    %v1384 = vpop.f32.mrb[0].mxu0
    %v1385 = vadd.f32 0.0, %v1384
    %v1386 = vpop.f32.mrb[0].mxu0
    %v1387 = vadd.f32 0.0, %v1386
    %v1388 = vpop.f32.mrb[0].mxu0
    %v1389 = vpop.f32.mrb[0].mxu0
    %1390 = vdwg.mxu0
    %v1391 = vadd.f32 %v1304, %v1344
    %v1392 = vadd.f32 %v1305, %v1346
    %v1393 = vadd.f32 %v1306, %v1385
    %v1394 = vadd.f32 %v1307, %v1387
    %v1395 = vxor.u32 %v1391, 2147483648
    %v1396 = vmul.f32 %v1395, 1.442695
    %v1397 = vpow.pop %v1396
    %v1398 = vadd.f32 %v1397, 1.0
    %v1399 = vrcp.pop %v1398
    %v1400 = vmul.f32 1.0, %v1399
    %v1401 = vxor.u32 %v1392, 2147483648
    %v1402 = vmul.f32 %v1401, 1.442695
    %v1403 = vpow.pop %v1402
    %v1404 = vadd.f32 %v1403, 1.0
    %v1405 = vrcp.pop %v1404
    %v1406 = vmul.f32 1.0, %v1405
    %v1407 = vtanh.pop %v1393
    %v1408 = vxor.u32 %v1394, 2147483648
    %v1409 = vmul.f32 %v1408, 1.442695
    %v1410 = vpow.pop %v1409
    %v1411 = vadd.f32 %v1410, 1.0
    %v1412 = vrcp.pop %v1411
    %v1413 = vmul.f32 1.0, %v1412
    %v1414 = vmul.f32 %v1406, %v1289
    %v1415 = vmul.f32 %v1400, %v1407
    %v1416 = vadd.f32 %v1414, %v1415
    %v1417 = vtanh.pop %v1416
    %v1418 = vmul.f32 %v1413, %v1417
    %s1419 = scalar_lea.vmem %s1, 40
    %v1420 = vld [vmem:[%s1419] sm:$0xff]
    %1422 = vset.pattern.permute.xlu0 0
    %1423 = vperm.xlu0 %1422, %v1420
    %v1424 = vpop.permute.xlu0 %1423
    %v1426 = vmul.f32 %v1424, %v1418
    %v1427 = vadd.f32 %v1300, %v1426
    %s1428 = smul.u32 6, 4
    %s1429 = smul.addr %s1428, 8
    %s1430 = scalar_lea.vmem [#allocation2], %s1429
    %v1431 = vld [vmem:[%s1430] sm:$0xff]
    %v1432 = vld [vmem:[%s1430 + $0x8] sm:$0xff]
    %v1433 = vld [vmem:[%s1430 + $0x10] sm:$0xff]
    %v1434 = vld [vmem:[%s1430 + $0x18] sm:$0xff]
    %v1435 = vpack.c.bf16 %v1418, %v1418
    %1436 = vmatprep.subr.bf16.mxu0 %v612
    %1437 = vmatpush1.bf16.msra.mxu0 %v611
    %1438 = vmatprep.subr.bf16.mxu0 %v616
    %1439 = vmatpush1.bf16.msra.mxu0 %v615
    %1440 = vmatprep.subr.bf16.mxu0 %v620
    %1441 = vmatpush1.bf16.msra.mxu0 %v619
    %1442 = vmatprep.subr.bf16.mxu0 %v624
    %1443 = vmatpush1.bf16.msra.mxu0 %v623
    %1444 = vmatprep.subr.bf16.mxu0 %v628
    %1445 = vmatpush1.bf16.msra.mxu0 %v627
    %1446 = vmatprep.subr.bf16.mxu0 %v632
    %1447 = vmatpush1.bf16.msra.mxu0 %v631
    %1448 = vmatprep.subr.bf16.mxu0 %v636
    %1449 = vmatpush1.bf16.msra.mxu0 %v635
    %1450 = vmatprep.subr.bf16.mxu0 %v640
    %1451 = vmatpush1.bf16.msra.mxu0 %v639
    %1452 = vmatprep.subr.bf16.mxu0 0
    %1453 = vmatpush1.bf16.msra.mxu0 0
    %1454 = vmatprep.subr.bf16.mxu0 0
    %1455 = vmatpush1.bf16.msra.mxu0 0
    %1456 = vmatprep.subr.bf16.mxu0 0
    %1457 = vmatpush1.bf16.msra.mxu0 0
    %1458 = vmatprep.subr.bf16.mxu0 0
    %1459 = vmatpush1.bf16.msra.mxu0 0
    %1460 = vmatprep.subr.bf16.mxu0 0
    %1461 = vmatpush1.bf16.msra.mxu0 0
    %1462 = vmatprep.subr.bf16.mxu0 0
    %1463 = vmatpush1.bf16.msra.mxu0 0
    %1464 = vmatprep.subr.bf16.mxu0 0
    %1465 = vmatpush1.bf16.msra.mxu0 0
    %1466 = vmatprep.subr.bf16.mxu0 0
    %1467 = vmatpush1.bf16.msra.mxu0 0
    %1468 = vmatprep.mubr.bf16.mxu0 0
    %1469 = vmatmul.mubr.bf16.gmra.mrb[0].mxu0 %v1435
    %v1470 = vpop.f32.mrb[0].mxu0
    %v1471 = vadd.f32 0.0, %v1470
    %v1472 = vpop.f32.mrb[0].mxu0
    %v1473 = vadd.f32 0.0, %v1472
    %v1474 = vpop.f32.mrb[0].mxu0
    %v1475 = vpop.f32.mrb[0].mxu0
    %1476 = vdwg.mxu0
    %1477 = vmatprep.subr.bf16.mxu0 %v614
    %1478 = vmatpush1.bf16.msra.mxu0 %v613
    %1479 = vmatprep.subr.bf16.mxu0 %v618
    %1480 = vmatpush1.bf16.msra.mxu0 %v617
    %1481 = vmatprep.subr.bf16.mxu0 %v622
    %1482 = vmatpush1.bf16.msra.mxu0 %v621
    %1483 = vmatprep.subr.bf16.mxu0 %v626
    %1484 = vmatpush1.bf16.msra.mxu0 %v625
    %1485 = vmatprep.subr.bf16.mxu0 %v630
    %1486 = vmatpush1.bf16.msra.mxu0 %v629
    %1487 = vmatprep.subr.bf16.mxu0 %v634
    %1488 = vmatpush1.bf16.msra.mxu0 %v633
    %1489 = vmatprep.subr.bf16.mxu0 %v638
    %1490 = vmatpush1.bf16.msra.mxu0 %v637
    %1491 = vmatprep.subr.bf16.mxu0 %v642
    %1492 = vmatpush1.bf16.msra.mxu0 %v641
    %1493 = vmatprep.subr.bf16.mxu0 0
    %1494 = vmatpush1.bf16.msra.mxu0 0
    %1495 = vmatprep.subr.bf16.mxu0 0
    %1496 = vmatpush1.bf16.msra.mxu0 0
    %1497 = vmatprep.subr.bf16.mxu0 0
    %1498 = vmatpush1.bf16.msra.mxu0 0
    %1499 = vmatprep.subr.bf16.mxu0 0
    %1500 = vmatpush1.bf16.msra.mxu0 0
    %1501 = vmatprep.subr.bf16.mxu0 0
    %1502 = vmatpush1.bf16.msra.mxu0 0
    %1503 = vmatprep.subr.bf16.mxu0 0
    %1504 = vmatpush1.bf16.msra.mxu0 0
    %1505 = vmatprep.subr.bf16.mxu0 0
    %1506 = vmatpush1.bf16.msra.mxu0 0
    %1507 = vmatprep.subr.bf16.mxu0 0
    %1508 = vmatpush1.bf16.msra.mxu0 0
    %1509 = vmatprep.mubr.bf16.mxu0 0
    %1510 = vmatmul.mubr.bf16.gmra.mrb[0].mxu0 %v1435
    %v1511 = vpop.f32.mrb[0].mxu0
    %v1512 = vadd.f32 0.0, %v1511
    %v1513 = vpop.f32.mrb[0].mxu0
    %v1514 = vadd.f32 0.0, %v1513
    %v1515 = vpop.f32.mrb[0].mxu0
    %v1516 = vpop.f32.mrb[0].mxu0
    %1517 = vdwg.mxu0
    %v1518 = vadd.f32 %v1431, %v1471
    %v1519 = vadd.f32 %v1432, %v1473
    %v1520 = vadd.f32 %v1433, %v1512
    %v1521 = vadd.f32 %v1434, %v1514
    %v1522 = vxor.u32 %v1518, 2147483648
    %v1523 = vmul.f32 %v1522, 1.442695
    %v1524 = vpow.pop %v1523
    %v1525 = vadd.f32 %v1524, 1.0
    %v1526 = vrcp.pop %v1525
    %v1527 = vmul.f32 1.0, %v1526
    %v1528 = vxor.u32 %v1519, 2147483648
    %v1529 = vmul.f32 %v1528, 1.442695
    %v1530 = vpow.pop %v1529
    %v1531 = vadd.f32 %v1530, 1.0
    %v1532 = vrcp.pop %v1531
    %v1533 = vmul.f32 1.0, %v1532
    %v1534 = vtanh.pop %v1520
    %v1535 = vxor.u32 %v1521, 2147483648
    %v1536 = vmul.f32 %v1535, 1.442695
    %v1537 = vpow.pop %v1536
    %v1538 = vadd.f32 %v1537, 1.0
    %v1539 = vrcp.pop %v1538
    %v1540 = vmul.f32 1.0, %v1539
    %v1541 = vmul.f32 %v1533, %v1416
    %v1542 = vmul.f32 %v1527, %v1534
    %v1543 = vadd.f32 %v1541, %v1542
    %v1544 = vtanh.pop %v1543
    %v1545 = vmul.f32 %v1540, %v1544
    %s1546 = scalar_lea.vmem %s1, 48
    %v1547 = vld [vmem:[%s1546] sm:$0xff]
    %1549 = vset.pattern.permute.xlu0 0
    %1550 = vperm.xlu0 %1549, %v1547
    %v1551 = vpop.permute.xlu0 %1550
    %v1553 = vmul.f32 %v1551, %v1545
    %v1554 = vadd.f32 %v1427, %v1553
    %s1555 = smul.u32 7, 4
    %s1556 = smul.addr %s1555, 8
    %s1557 = scalar_lea.vmem [#allocation2], %s1556
    %v1558 = vld [vmem:[%s1557] sm:$0xff]
    %v1559 = vld [vmem:[%s1557 + $0x8] sm:$0xff]
    %v1560 = vld [vmem:[%s1557 + $0x10] sm:$0xff]
    %v1561 = vld [vmem:[%s1557 + $0x18] sm:$0xff]
    %v1562 = vpack.c.bf16 %v1545, %v1545
    %1563 = vmatprep.subr.bf16.mxu0 %v612
    %1564 = vmatpush1.bf16.msra.mxu0 %v611
    %1565 = vmatprep.subr.bf16.mxu0 %v616
    %1566 = vmatpush1.bf16.msra.mxu0 %v615
    %1567 = vmatprep.subr.bf16.mxu0 %v620
    %1568 = vmatpush1.bf16.msra.mxu0 %v619
    %1569 = vmatprep.subr.bf16.mxu0 %v624
    %1570 = vmatpush1.bf16.msra.mxu0 %v623
    %1571 = vmatprep.subr.bf16.mxu0 %v628
    %1572 = vmatpush1.bf16.msra.mxu0 %v627
    %1573 = vmatprep.subr.bf16.mxu0 %v632
    %1574 = vmatpush1.bf16.msra.mxu0 %v631
    %1575 = vmatprep.subr.bf16.mxu0 %v636
    %1576 = vmatpush1.bf16.msra.mxu0 %v635
    %1577 = vmatprep.subr.bf16.mxu0 %v640
    %1578 = vmatpush1.bf16.msra.mxu0 %v639
    %1579 = vmatprep.subr.bf16.mxu0 0
    %1580 = vmatpush1.bf16.msra.mxu0 0
    %1581 = vmatprep.subr.bf16.mxu0 0
    %1582 = vmatpush1.bf16.msra.mxu0 0
    %1583 = vmatprep.subr.bf16.mxu0 0
    %1584 = vmatpush1.bf16.msra.mxu0 0
    %1585 = vmatprep.subr.bf16.mxu0 0
    %1586 = vmatpush1.bf16.msra.mxu0 0
    %1587 = vmatprep.subr.bf16.mxu0 0
    %1588 = vmatpush1.bf16.msra.mxu0 0
    %1589 = vmatprep.subr.bf16.mxu0 0
    %1590 = vmatpush1.bf16.msra.mxu0 0
    %1591 = vmatprep.subr.bf16.mxu0 0
    %1592 = vmatpush1.bf16.msra.mxu0 0
    %1593 = vmatprep.subr.bf16.mxu0 0
    %1594 = vmatpush1.bf16.msra.mxu0 0
    %1595 = vmatprep.mubr.bf16.mxu0 0
    %1596 = vmatmul.mubr.bf16.gmra.mrb[0].mxu0 %v1562
    %v1597 = vpop.f32.mrb[0].mxu0
    %v1598 = vadd.f32 0.0, %v1597
    %v1599 = vpop.f32.mrb[0].mxu0
    %v1600 = vadd.f32 0.0, %v1599
    %v1601 = vpop.f32.mrb[0].mxu0
    %v1602 = vpop.f32.mrb[0].mxu0
    %1603 = vdwg.mxu0
    %1604 = vmatprep.subr.bf16.mxu0 %v614
    %1605 = vmatpush1.bf16.msra.mxu0 %v613
    %1606 = vmatprep.subr.bf16.mxu0 %v618
    %1607 = vmatpush1.bf16.msra.mxu0 %v617
    %1608 = vmatprep.subr.bf16.mxu0 %v622
    %1609 = vmatpush1.bf16.msra.mxu0 %v621
    %1610 = vmatprep.subr.bf16.mxu0 %v626
    %1611 = vmatpush1.bf16.msra.mxu0 %v625
    %1612 = vmatprep.subr.bf16.mxu0 %v630
    %1613 = vmatpush1.bf16.msra.mxu0 %v629
    %1614 = vmatprep.subr.bf16.mxu0 %v634
    %1615 = vmatpush1.bf16.msra.mxu0 %v633
    %1616 = vmatprep.subr.bf16.mxu0 %v638
    %1617 = vmatpush1.bf16.msra.mxu0 %v637
    %1618 = vmatprep.subr.bf16.mxu0 %v642
    %1619 = vmatpush1.bf16.msra.mxu0 %v641
    %1620 = vmatprep.subr.bf16.mxu0 0
    %1621 = vmatpush1.bf16.msra.mxu0 0
    %1622 = vmatprep.subr.bf16.mxu0 0
    %1623 = vmatpush1.bf16.msra.mxu0 0
    %1624 = vmatprep.subr.bf16.mxu0 0
    %1625 = vmatpush1.bf16.msra.mxu0 0
    %1626 = vmatprep.subr.bf16.mxu0 0
    %1627 = vmatpush1.bf16.msra.mxu0 0
    %1628 = vmatprep.subr.bf16.mxu0 0
    %1629 = vmatpush1.bf16.msra.mxu0 0
    %1630 = vmatprep.subr.bf16.mxu0 0
    %1631 = vmatpush1.bf16.msra.mxu0 0
    %1632 = vmatprep.subr.bf16.mxu0 0
    %1633 = vmatpush1.bf16.msra.mxu0 0
    %1634 = vmatprep.subr.bf16.mxu0 0
    %1635 = vmatpush1.bf16.msra.mxu0 0
    %1636 = vmatprep.mubr.bf16.mxu0 0
    %1637 = vmatmul.mubr.bf16.gmra.mrb[0].mxu0 %v1562
    %v1638 = vpop.f32.mrb[0].mxu0
    %v1639 = vadd.f32 0.0, %v1638
    %v1640 = vpop.f32.mrb[0].mxu0
    %v1641 = vadd.f32 0.0, %v1640
    %v1642 = vpop.f32.mrb[0].mxu0
    %v1643 = vpop.f32.mrb[0].mxu0
    %1644 = vdwg.mxu0
    %v1645 = vadd.f32 %v1558, %v1598
    %v1646 = vadd.f32 %v1559, %v1600
    %v1647 = vadd.f32 %v1560, %v1639
    %v1648 = vadd.f32 %v1561, %v1641
    %v1649 = vxor.u32 %v1645, 2147483648
    %v1650 = vmul.f32 %v1649, 1.442695
    %v1651 = vpow.pop %v1650
    %v1652 = vadd.f32 %v1651, 1.0
    %v1653 = vrcp.pop %v1652
    %v1654 = vmul.f32 1.0, %v1653
    %v1655 = vxor.u32 %v1646, 2147483648
    %v1656 = vmul.f32 %v1655, 1.442695
    %v1657 = vpow.pop %v1656
    %v1658 = vadd.f32 %v1657, 1.0
    %v1659 = vrcp.pop %v1658
    %v1660 = vmul.f32 1.0, %v1659
    %v1661 = vtanh.pop %v1647
    %v1662 = vxor.u32 %v1648, 2147483648
    %v1663 = vmul.f32 %v1662, 1.442695
    %v1664 = vpow.pop %v1663
    %v1665 = vadd.f32 %v1664, 1.0
    %v1666 = vrcp.pop %v1665
    %v1667 = vmul.f32 1.0, %v1666
    %v1668 = vmul.f32 %v1660, %v1543
    %v1669 = vmul.f32 %v1654, %v1661
    %v1670 = vadd.f32 %v1668, %v1669
    %v1671 = vtanh.pop %v1670
    %v1672 = vmul.f32 %v1667, %v1671
    %s1673 = scalar_lea.vmem %s1, 56
    %v1674 = vld [vmem:[%s1673] sm:$0xff]
    %1676 = vset.pattern.permute.xlu0 0
    %1677 = vperm.xlu0 %1676, %v1674
    %v1678 = vpop.permute.xlu0 %1677
    %v1680 = vmul.f32 %v1678, %v1672
    %v1681 = vadd.f32 %v1554, %v1680
    %1682 = vst [vmem:[#allocation3] sm:$0xff] %v1672
    %1683 = vst [vmem:[#allocation4] sm:$0xff] %v1670
    %1684 = vst [vmem:[#allocation5] sm:$0xff] %v1681
    // Predicated region
    $region38: #{lstm_classifier_forward.1} parent=1 // pred_check
      %p1685 = pneg %p41
    $region39: #{lstm_classifier_forward.1} parent=1 // pred_check_branch
      %1687 = sbr.rel (%p1685) target = $region41
    $region40: #{lstm_classifier_forward.1} parent=1 // pred_region
      %v1688 = vld [vmem:[#allocation5] sm:$0xff]
      %v1689 = vld [vmem:[#allocation6] sm:$0xff]
      %v1690 = vld [vmem:[#allocation6 + $0x8] sm:$0xff]
      %v1691 = vld [vmem:[#allocation6 + $0x10] sm:$0xff]
      %v1692 = vld [vmem:[#allocation6 + $0x18] sm:$0xff]
      %v1693 = vld [vmem:[#allocation6 + $0x20] sm:$0xff]
      %v1694 = vld [vmem:[#allocation6 + $0x28] sm:$0xff]
      %v1695 = vld [vmem:[#allocation6 + $0x30] sm:$0xff]
      %v1696 = vld [vmem:[#allocation6 + $0x38] sm:$0xff]
      %v1697 = vld [vmem:[#allocation6 + $0x40] sm:$0xff]
      %v1698 = vld [vmem:[#allocation6 + $0x48] sm:$0xff]
      %v1699 = vld [vmem:[#allocation6 + $0x50] sm:$0xff]
      %v1700 = vld [vmem:[#allocation6 + $0x58] sm:$0xff]
      %v1701 = vld [vmem:[#allocation6 + $0x60] sm:$0xff]
      %v1702 = vld [vmem:[#allocation6 + $0x68] sm:$0xff]
      %v1703 = vld [vmem:[#allocation6 + $0x70] sm:$0xff]
      %v1704 = vld [vmem:[#allocation6 + $0x78] sm:$0xff]
      %v1705 = vld [vmem:[%s6] sm:$0x1]
      %v1707 = vlaneseq
      %v1708 = vshrl.u32 %v1707, 7
      %v1709 = vsub.s32 0, %v1708
      %v1710 = vrot.slane %v1705, %v1709
      %1712 = vmatprep.subr.mxu0 0.0
      %1713 = vmatpush1.msra.mxu0 %v1689
      %1714 = vmatprep.subr.mxu0 0.0
      %1715 = vmatpush1.msra.mxu0 %v1690
      %1716 = vmatprep.subr.mxu0 0.0
      %1717 = vmatpush1.msra.mxu0 %v1691
      %1718 = vmatprep.subr.mxu0 0.0
      %1719 = vmatpush1.msra.mxu0 %v1692
      %1720 = vmatprep.subr.mxu0 0.0
      %1721 = vmatpush1.msra.mxu0 %v1693
      %1722 = vmatprep.subr.mxu0 0.0
      %1723 = vmatpush1.msra.mxu0 %v1694
      %1724 = vmatprep.subr.mxu0 0.0
      %1725 = vmatpush1.msra.mxu0 %v1695
      %1726 = vmatprep.subr.mxu0 0.0
      %1727 = vmatpush1.msra.mxu0 %v1696
      %1728 = vmatprep.subr.mxu0 0.0
      %1729 = vmatpush1.msra.mxu0 %v1697
      %1730 = vmatprep.subr.mxu0 0.0
      %1731 = vmatpush1.msra.mxu0 %v1698
      %1732 = vmatprep.subr.mxu0 0.0
      %1733 = vmatpush1.msra.mxu0 %v1699
      %1734 = vmatprep.subr.mxu0 0.0
      %1735 = vmatpush1.msra.mxu0 %v1700
      %1736 = vmatprep.subr.mxu0 0.0
      %1737 = vmatpush1.msra.mxu0 %v1701
      %1738 = vmatprep.subr.mxu0 0.0
      %1739 = vmatpush1.msra.mxu0 %v1702
      %1740 = vmatprep.subr.mxu0 0.0
      %1741 = vmatpush1.msra.mxu0 %v1703
      %1742 = vmatprep.subr.mxu0 0.0
      %1743 = vmatpush1.msra.mxu0 %v1704
      %1744 = vmatprep.subr.mxu0 0.0
      %1745 = vmatpush1.msra.mxu0 0.0
      %1746 = vmatprep.subr.mxu0 0.0
      %1747 = vmatpush1.msra.mxu0 0.0
      %1748 = vmatprep.subr.mxu0 0.0
      %1749 = vmatpush1.msra.mxu0 0.0
      %1750 = vmatprep.subr.mxu0 0.0
      %1751 = vmatpush1.msra.mxu0 0.0
      %1752 = vmatprep.subr.mxu0 0.0
      %1753 = vmatpush1.msra.mxu0 0.0
      %1754 = vmatprep.subr.mxu0 0.0
      %1755 = vmatpush1.msra.mxu0 0.0
      %1756 = vmatprep.subr.mxu0 0.0
      %1757 = vmatpush1.msra.mxu0 0.0
      %1758 = vmatprep.subr.mxu0 0.0
      %1759 = vmatpush1.msra.mxu0 0.0
      %1760 = vmatprep.subr.mxu0 0.0
      %1761 = vmatpush1.msra.mxu0 0.0
      %1762 = vmatprep.subr.mxu0 0.0
      %1763 = vmatpush1.msra.mxu0 0.0
      %1764 = vmatprep.subr.mxu0 0.0
      %1765 = vmatpush1.msra.mxu0 0.0
      %1766 = vmatprep.subr.mxu0 0.0
      %1767 = vmatpush1.msra.mxu0 0.0
      %1768 = vmatprep.subr.mxu0 0.0
      %1769 = vmatpush1.msra.mxu0 0.0
      %1770 = vmatprep.subr.mxu0 0.0
      %1771 = vmatpush1.msra.mxu0 0.0
      %1772 = vmatprep.subr.mxu0 0.0
      %1773 = vmatpush1.msra.mxu0 0.0
      %1774 = vmatprep.subr.mxu0 0.0
      %1775 = vmatpush1.msra.mxu0 0.0
      %1776 = vmatprep.mubr.f32.mxu0 0.0
      %1777 = vmatmul.mubr.f32.gmra.mrb[0].mxu0 %v1688
      %v1778 = vpop.f32.mrb[0].mxu0
      %v1779 = vadd.f32 %v1710, %v1778
      %v1780 = vpop.f32.mrb[0].mxu0
      %1781 = vdwg.mxu0
      %1782 = vst [vmem:[%s7] sm:$0xff] %v1779
    $region41: #{lstm_classifier_forward.1} parent=1 // pred_fallthru
      _
    // Predicated region
    $region42: #{lstm_classifier_forward.1} parent=1 // pred_check
      _
    $region43: #{lstm_classifier_forward.1} parent=1 // pred_check_branch
      %1784 = sbr.rel (0) target = $region45
    $region44: #{lstm_classifier_forward.1} parent=1 // pred_region
      _
    $region45: #{lstm_classifier_forward.1} parent=1 // pred_fallthru
      _
    // Predicated region
    $region46: #{lstm_classifier_forward.1} parent=1 // pred_check
      _
    $region47: #{lstm_classifier_forward.1} parent=1 // pred_check_branch
      %1786 = sbr.rel (0) target = $region49
    $region48: #{lstm_classifier_forward.1} parent=1 // pred_region
      _
    $region49: #{lstm_classifier_forward.1} parent=1 // pred_fallthru
      _
    %1787 = vsyncpa [#allocation7], 1

</llo_original>
